<compile_context>
chip_gen: v7x
topology: tpu7x:2x2x1
jax: 0.10.0
libtpu: 0.0.40
codegen_flags: <defaults>
</compile_context>

<pallas_src>
import math
from functools import partial

import jax
import jax.numpy as jnp
from jax import lax
from jax.experimental import pallas as pl
from jax.experimental.pallas import tpu as pltpu


# ----------------------------- small helpers -------------------------------

def _layer_norm(x, g, b, eps=1e-5):          # torch.nn.LayerNorm default eps
    mu = jnp.mean(x, axis=-1, keepdims=True)
    var = jnp.mean((x - mu) ** 2, axis=-1, keepdims=True)
    return (x - mu) * lax.rsqrt(var + eps) * g + b


def _softmax_last(x):
    x = x - jnp.max(x, axis=-1, keepdims=True)
    e = jnp.exp(x)
    return e / jnp.sum(e, axis=-1, keepdims=True)


# ----------------------------- fused encoder kernel ------------------------

def _encoder_kernel(x_ref, mask_ref, wqkv_ref, bqkv_ref, wo_ref, bo_ref,
                    ln1g_ref, ln1b_ref, w1_ref, b1_ref, w2_ref, b2_ref,
                    ln2g_ref, ln2b_ref, o_ref, heat_ref,
                    *, B, S, h, q, v, causal):
    x = x_ref[...]                                     # (B*S, D)
    qh, vh = h * q, h * v

    # One fused QKV projection on the whole batch slab: (B*S, D) @ (D, 2qh+vh)
    qkv = (jnp.dot(x, wqkv_ref[...], preferred_element_type=jnp.float32)
           + bqkv_ref[...])
    Q = qkv[:, :qh]
    K = qkv[:, qh:2 * qh]
    V = qkv[:, 2 * qh:]

    neg_inf = jnp.float32(-2.0 ** 32 + 1)              # matches torch self.inf
    wv_rows = []                                       # per-batch (S, h*v)
    for b in range(B):                                 # B is small & static
        r0 = b * S
        # Head-batched views (h, S, q) / (h, S, v) built from static lane slices.
        Qb = jnp.stack([Q[r0:r0 + S, i * q:(i + 1) * q] for i in range(h)], axis=0)
        Kb = jnp.stack([K[r0:r0 + S, i * q:(i + 1) * q] for i in range(h)], axis=0)
        Vb = jnp.stack([V[r0:r0 + S, i * v:(i + 1) * v] for i in range(h)], axis=0)

        # scores: contract q axis directly (no explicit transpose), batch over h.
        s = lax.dot_general(Qb, Kb, (((2,), (2,)), ((0,), (0,))),
                            preferred_element_type=jnp.float32)   # (h, S, S)
        heat_ref[b] = s                                # raw (pre-mask) scores
        if causal:                                     # stage == 'train'
            s = jnp.where(mask_ref[...] > 0.0, s, neg_inf)
        p = _softmax_last(s)
        ctx = lax.dot_general(p, Vb, (((2,), (1,)), ((0,), (0,))),
                              preferred_element_type=jnp.float32)  # (h, S, v)
        # concat heads along lanes -> (S, h*v); single out-proj matmul later.
        wv_rows.append(jnp.concatenate([ctx[i] for i in range(h)], axis=-1))

    weight_v = jnp.concatenate(wv_rows, axis=0)        # (B*S, h*v)
    attn = (jnp.dot(weight_v, wo_ref[...], preferred_element_type=jnp.float32)
            + bo_ref[...])

    # TODO(synk): Dropout(p=0.2) omitted (identity) -- deterministic kernel.
    x1 = _layer_norm(attn + x, ln1g_ref[...], ln1b_ref[...])

    ff = jnp.dot(x1, w1_ref[...], preferred_element_type=jnp.float32) + b1_ref[...]
    ff = jnp.maximum(ff, 0.0)
    ff = jnp.dot(ff, w2_ref[...], preferred_element_type=jnp.float32) + b2_ref[...]
    o_ref[...] = _layer_norm(ff + x1, ln2g_ref[...], ln2b_ref[...])


# ----------------------------- wrapper --------------------------------------

def encoder_forward(x, p, *, h, q, v, stage='train'):
    B, S, D = x.shape
    qh, vh = h * q, h * v
    H = p['w1_t'].shape[1]
    causal = (stage == 'train')

    # Causal keep-mask (tril, diagonal=0) hoisted out of the kernel.
    row = jnp.arange(S, dtype=jnp.int32)[:, None]
    col = jnp.arange(S, dtype=jnp.int32)[None, :]
    keep = (col <= row).astype(jnp.float32)            # (S, S)

    # Fuse Q/K/V projections into a single matmul (wrapper-side weight concat).
    wqkv_t = jnp.concatenate([p['wq_t'], p['wk_t'], p['wv_t']], axis=1)  # (D, 2qh+vh)
    bqkv = jnp.concatenate([p['bq'], p['bk'], p['bv']], axis=1)          # (1, 2qh+vh)

    x_slab = x.reshape(B * S, D)

    def full(shape):
        n = len(shape)
        return pl.BlockSpec(shape, lambda i, n=n: (0,) * n)

    out_slab, heat = pl.pallas_call(
        partial(_encoder_kernel, B=B, S=S, h=h, q=q, v=v, causal=causal),
        out_shape=(jax.ShapeDtypeStruct((B * S, D), jnp.float32),
                   jax.ShapeDtypeStruct((B, h, S, S), jnp.float32)),
        grid=(1,),
        in_specs=[full((B * S, D)), full((S, S)),
                  full((D, 2 * qh + vh)), full((1, 2 * qh + vh)),
                  full((vh, D)), full((1, D)),
                  full((1, D)), full((1, D)),
                  full((D, H)), full((1, H)),
                  full((H, D)), full((1, D)),
                  full((1, D)), full((1, D))],
        out_specs=(full((B * S, D)), full((B, h, S, S))),
        compiler_params=pltpu.CompilerParams(
            dimension_semantics=("arbitrary",)),
    )(x_slab, keep, wqkv_t, bqkv, p['wo_t'], p['bo'],
      p['ln1_g'], p['ln1_b'], p['w1_t'], p['b1'], p['w2_t'], p['b2'],
      p['ln2_g'], p['ln2_b'])

    out = out_slab.reshape(B, S, D)
    # torch layout: heatmap_score[head * B + b] = scores(head, batch b)
    heatmap = jnp.transpose(heat, (1, 0, 2, 3)).reshape(h * B, S, S)
    return out, heatmap


# ----------------------------- parameter init -------------------------------

def init_linear(key, fan_in, fan_out):
    # torch.nn.Linear default: U(-1/sqrt(fan_in), 1/sqrt(fan_in))
    kw, kb = jax.random.split(key)
    bound = 1.0 / math.sqrt(fan_in)
    w = jax.random.uniform(kw, (fan_out, fan_in), jnp.float32, -bound, bound)
    b = jax.random.uniform(kb, (fan_out,), jnp.float32, -bound, bound)
    return w, b


def init_encoder_params(key, d_model, d_hidden, q, v, h):
    ks = jax.random.split(key, 6)
    wq, bq = init_linear(ks[0], d_model, q * h)
    wk, bk = init_linear(ks[1], d_model, q * h)
    wv, bv = init_linear(ks[2], d_model, v * h)
    wo, bo = init_linear(ks[3], v * h, d_model)
    w1, b1 = init_linear(ks[4], d_model, d_hidden)
    w2, b2 = init_linear(ks[5], d_hidden, d_model)
    return dict(
        wq_t=wq.T, bq=bq[None, :], wk_t=wk.T, bk=bk[None, :],
        wv_t=wv.T, bv=bv[None, :], wo_t=wo.T, bo=bo[None, :],
        ln1_g=jnp.ones((1, d_model), jnp.float32),
        ln1_b=jnp.zeros((1, d_model), jnp.float32),
        w1_t=w1.T, b1=b1[None, :], w2_t=w2.T, b2=b2[None, :],
        ln2_g=jnp.ones((1, d_model), jnp.float32),
        ln2_b=jnp.zeros((1, d_model), jnp.float32),
    )


# ----------------------------- main ------------------------------------------

if __name__ == "__main__":
    B, S = 2, 16                 # batch, sequence length
    d_model, d_hidden = 32, 64
    q = v = 8
    h = 4

    root = jax.random.PRNGKey(0)
    k_par, k_x = jax.random.split(root)
    params = init_encoder_params(k_par, d_model, d_hidden, q, v, h)
    x = jax.random.normal(k_x, (B, S, d_model), jnp.float32)

    fwd = jax.jit(partial(encoder_forward, h=h, q=q, v=v, stage='train'))
    out, heat = fwd(x, params)
    out = jax.block_until_ready(out)
    heat = jax.block_until_ready(heat)

    assert out.shape == (B, S, d_model)
    assert heat.shape == (h * B, S, S)
    assert bool(jnp.all(jnp.isfinite(out)))
    print("KERNEL_OK")
</pallas_src>

<mosaic_0001>
module attributes {stable_mosaic.version = 11 : i64} {
  func.func @_encoder_kernel(%arg0: i32, %arg1: memref<32x32xf32, #tpu.memory_space<vmem>>, %arg2: memref<16x16xf32, #tpu.memory_space<vmem>>, %arg3: memref<32x96xf32, #tpu.memory_space<vmem>>, %arg4: memref<1x96xf32, #tpu.memory_space<vmem>>, %arg5: memref<32x32xf32, #tpu.memory_space<vmem>>, %arg6: memref<1x32xf32, #tpu.memory_space<vmem>>, %arg7: memref<1x32xf32, #tpu.memory_space<vmem>>, %arg8: memref<1x32xf32, #tpu.memory_space<vmem>>, %arg9: memref<32x64xf32, #tpu.memory_space<vmem>>, %arg10: memref<1x64xf32, #tpu.memory_space<vmem>>, %arg11: memref<64x32xf32, #tpu.memory_space<vmem>>, %arg12: memref<1x32xf32, #tpu.memory_space<vmem>>, %arg13: memref<1x32xf32, #tpu.memory_space<vmem>>, %arg14: memref<1x32xf32, #tpu.memory_space<vmem>>, %arg15: memref<32x32xf32, #tpu.memory_space<vmem>>, %arg16: memref<2x4x16x16xf32, #tpu.memory_space<vmem>>) attributes {dimension_semantics = [#tpu.dimension_semantics<arbitrary>], iteration_bounds = array<i64: 1>, scalar_prefetch = 0 : i64, scratch_operands = 0 : i64, tpu.core_type = #tpu.core_type<tc>, window_params = [{pipeline_mode = #tpu.pipeline_mode<synchronous>, transform_indices = @transform_0, window_bounds = array<i64: 32, 32>}, {pipeline_mode = #tpu.pipeline_mode<synchronous>, transform_indices = @transform_1, window_bounds = array<i64: 16, 16>}, {pipeline_mode = #tpu.pipeline_mode<synchronous>, transform_indices = @transform_2, window_bounds = array<i64: 32, 96>}, {pipeline_mode = #tpu.pipeline_mode<synchronous>, transform_indices = @transform_3, window_bounds = array<i64: 1, 96>}, {pipeline_mode = #tpu.pipeline_mode<synchronous>, transform_indices = @transform_4, window_bounds = array<i64: 32, 32>}, {pipeline_mode = #tpu.pipeline_mode<synchronous>, transform_indices = @transform_5, window_bounds = array<i64: 1, 32>}, {pipeline_mode = #tpu.pipeline_mode<synchronous>, transform_indices = @transform_6, window_bounds = array<i64: 1, 32>}, {pipeline_mode = #tpu.pipeline_mode<synchronous>, transform_indices = @transform_7, window_bounds = array<i64: 1, 32>}, {pipeline_mode = #tpu.pipeline_mode<synchronous>, transform_indices = @transform_8, window_bounds = array<i64: 32, 64>}, {pipeline_mode = #tpu.pipeline_mode<synchronous>, transform_indices = @transform_9, window_bounds = array<i64: 1, 64>}, {pipeline_mode = #tpu.pipeline_mode<synchronous>, transform_indices = @transform_10, window_bounds = array<i64: 64, 32>}, {pipeline_mode = #tpu.pipeline_mode<synchronous>, transform_indices = @transform_11, window_bounds = array<i64: 1, 32>}, {pipeline_mode = #tpu.pipeline_mode<synchronous>, transform_indices = @transform_12, window_bounds = array<i64: 1, 32>}, {pipeline_mode = #tpu.pipeline_mode<synchronous>, transform_indices = @transform_13, window_bounds = array<i64: 1, 32>}, {pipeline_mode = #tpu.pipeline_mode<synchronous>, transform_indices = @transform_14, window_bounds = array<i64: 32, 32>}, {pipeline_mode = #tpu.pipeline_mode<synchronous>, transform_indices = @transform_15, window_bounds = array<i64: 2, 4, 16, 16>}]} {
    %c0 = arith.constant 0 : index
    %c0_0 = arith.constant 0 : index
    %0 = vector.load %arg1[%c0, %c0_0] : memref<32x32xf32, #tpu.memory_space<vmem>>, vector<32x32xf32>
    %c0_1 = arith.constant 0 : index
    %c0_2 = arith.constant 0 : index
    %1 = vector.load %arg3[%c0_1, %c0_2] : memref<32x96xf32, #tpu.memory_space<vmem>>, vector<32x96xf32>
    %cst = arith.constant dense<0.000000e+00> : vector<32x96xf32>
    %2 = tpu.matmul %0, %1, %cst {dimension_numbers = #tpu.dot_dimension_numbers<[1], [0], [0], [1], [0, 0, 1, 1], [], []>} : vector<32x32xf32>, vector<32x96xf32>, vector<32x96xf32> -> vector<32x96xf32>
    %c0_3 = arith.constant 0 : index
    %c0_4 = arith.constant 0 : index
    %3 = vector.load %arg4[%c0_3, %c0_4] : memref<1x96xf32, #tpu.memory_space<vmem>>, vector<1x96xf32>
    %4 = vector.broadcast %3 : vector<1x96xf32> to vector<32x96xf32>
    %5 = arith.addf %2, %4 : vector<32x96xf32>
    %6 = vector.extract_strided_slice %5 {offsets = [0, 0], sizes = [32, 32], strides = [1, 1]} : vector<32x96xf32> to vector<32x32xf32>
    %7 = vector.extract_strided_slice %5 {offsets = [0, 32], sizes = [32, 32], strides = [1, 1]} : vector<32x96xf32> to vector<32x32xf32>
    %8 = vector.extract_strided_slice %5 {offsets = [0, 64], sizes = [32, 32], strides = [1, 1]} : vector<32x96xf32> to vector<32x32xf32>
    %9 = vector.extract_strided_slice %6 {offsets = [0, 0], sizes = [16, 8], strides = [1, 1]} : vector<32x32xf32> to vector<16x8xf32>
    %10 = vector.extract_strided_slice %6 {offsets = [0, 8], sizes = [16, 8], strides = [1, 1]} : vector<32x32xf32> to vector<16x8xf32>
    %11 = vector.extract_strided_slice %6 {offsets = [0, 16], sizes = [16, 8], strides = [1, 1]} : vector<32x32xf32> to vector<16x8xf32>
    %12 = vector.extract_strided_slice %6 {offsets = [0, 24], sizes = [16, 8], strides = [1, 1]} : vector<32x32xf32> to vector<16x8xf32>
    %13 = vector.shape_cast %9 : vector<16x8xf32> to vector<1x16x8xf32>
    %14 = vector.shape_cast %10 : vector<16x8xf32> to vector<1x16x8xf32>
    %15 = vector.shape_cast %11 : vector<16x8xf32> to vector<1x16x8xf32>
    %16 = vector.shape_cast %12 : vector<16x8xf32> to vector<1x16x8xf32>
    %17 = tpu.concatenate %13, %14, %15, %16 in 0 : vector<1x16x8xf32>, vector<1x16x8xf32>, vector<1x16x8xf32>, vector<1x16x8xf32> -> vector<4x16x8xf32>
    %18 = vector.extract_strided_slice %7 {offsets = [0, 0], sizes = [16, 8], strides = [1, 1]} : vector<32x32xf32> to vector<16x8xf32>
    %19 = vector.extract_strided_slice %7 {offsets = [0, 8], sizes = [16, 8], strides = [1, 1]} : vector<32x32xf32> to vector<16x8xf32>
    %20 = vector.extract_strided_slice %7 {offsets = [0, 16], sizes = [16, 8], strides = [1, 1]} : vector<32x32xf32> to vector<16x8xf32>
    %21 = vector.extract_strided_slice %7 {offsets = [0, 24], sizes = [16, 8], strides = [1, 1]} : vector<32x32xf32> to vector<16x8xf32>
    %22 = vector.shape_cast %18 : vector<16x8xf32> to vector<1x16x8xf32>
    %23 = vector.shape_cast %19 : vector<16x8xf32> to vector<1x16x8xf32>
    %24 = vector.shape_cast %20 : vector<16x8xf32> to vector<1x16x8xf32>
    %25 = vector.shape_cast %21 : vector<16x8xf32> to vector<1x16x8xf32>
    %26 = tpu.concatenate %22, %23, %24, %25 in 0 : vector<1x16x8xf32>, vector<1x16x8xf32>, vector<1x16x8xf32>, vector<1x16x8xf32> -> vector<4x16x8xf32>
    %27 = vector.extract_strided_slice %8 {offsets = [0, 0], sizes = [16, 8], strides = [1, 1]} : vector<32x32xf32> to vector<16x8xf32>
    %28 = vector.extract_strided_slice %8 {offsets = [0, 8], sizes = [16, 8], strides = [1, 1]} : vector<32x32xf32> to vector<16x8xf32>
    %29 = vector.extract_strided_slice %8 {offsets = [0, 16], sizes = [16, 8], strides = [1, 1]} : vector<32x32xf32> to vector<16x8xf32>
    %30 = vector.extract_strided_slice %8 {offsets = [0, 24], sizes = [16, 8], strides = [1, 1]} : vector<32x32xf32> to vector<16x8xf32>
    %31 = vector.shape_cast %27 : vector<16x8xf32> to vector<1x16x8xf32>
    %32 = vector.shape_cast %28 : vector<16x8xf32> to vector<1x16x8xf32>
    %33 = vector.shape_cast %29 : vector<16x8xf32> to vector<1x16x8xf32>
    %34 = vector.shape_cast %30 : vector<16x8xf32> to vector<1x16x8xf32>
    %35 = tpu.concatenate %31, %32, %33, %34 in 0 : vector<1x16x8xf32>, vector<1x16x8xf32>, vector<1x16x8xf32>, vector<1x16x8xf32> -> vector<4x16x8xf32>
    %cst_5 = arith.constant dense<0.000000e+00> : vector<4x16x16xf32>
    %36 = tpu.matmul %17, %26, %cst_5 {dimension_numbers = #tpu.dot_dimension_numbers<[2], [2], [1], [1], [0, 0, 0, 1, 1, 1], [0], [0]>} : vector<4x16x8xf32>, vector<4x16x8xf32>, vector<4x16x16xf32> -> vector<4x16x16xf32>
    %c0_6 = arith.constant 0 : index
    %c0_7 = arith.constant 0 : index
    %c0_8 = arith.constant 0 : index
    %c0_9 = arith.constant 0 : index
    %37 = vector.load %arg16[%c0_6, %c0_7, %c0_8, %c0_9] : memref<2x4x16x16xf32, #tpu.memory_space<vmem>>, vector<1x4x16x16xf32>
    %38 = vector.shape_cast %37 : vector<1x4x16x16xf32> to vector<4x16x16xf32>
    %39 = vector.shape_cast %36 : vector<4x16x16xf32> to vector<1x4x16x16xf32>
    tpu.vector_store %arg16[%c0_6, %c0_7, %c0_8, %c0_9], %39 {strides = array<i32>} : memref<2x4x16x16xf32, #tpu.memory_space<vmem>>, vector<1x4x16x16xf32>,
    %c0_10 = arith.constant 0 : index
    %c0_11 = arith.constant 0 : index
    %40 = vector.load %arg2[%c0_10, %c0_11] : memref<16x16xf32, #tpu.memory_space<vmem>>, vector<16x16xf32>
    %cst_12 = arith.constant 0.000000e+00 : f32
    %41 = vector.broadcast %cst_12 : f32 to vector<16x16xf32>
    %42 = arith.cmpf ogt, %40, %41 : vector<16x16xf32>
    %cst_13 = arith.constant -4.2949673E+9 : f32
    %43 = vector.shape_cast %42 : vector<16x16xi1> to vector<1x16x16xi1>
    %44 = vector.broadcast %43 : vector<1x16x16xi1> to vector<4x16x16xi1>
    %45 = vector.broadcast %cst_13 : f32 to vector<4x16x16xf32>
    %46 = arith.select %44, %36, %45 : vector<4x16x16xi1>, vector<4x16x16xf32>
    %cst_14 = arith.constant dense<0xFF800000> : vector<4x16xf32>
    %47 = vector.multi_reduction <maximumf>, %46, %cst_14 [2] : vector<4x16x16xf32> to vector<4x16xf32>
    %48 = vector.shape_cast %47 : vector<4x16xf32> to vector<4x16x1xf32>
    %49 = vector.broadcast %48 : vector<4x16x1xf32> to vector<4x16x16xf32>
    %50 = arith.subf %46, %49 : vector<4x16x16xf32>
    %51 = math.exp %50 : vector<4x16x16xf32>
    %cst_15 = arith.constant dense<0.000000e+00> : vector<4x16xf32>
    %52 = vector.multi_reduction <add>, %51, %cst_15 [2] : vector<4x16x16xf32> to vector<4x16xf32>
    %53 = vector.shape_cast %52 : vector<4x16xf32> to vector<4x16x1xf32>
    %54 = vector.broadcast %53 : vector<4x16x1xf32> to vector<4x16x16xf32>
    %55 = arith.divf %51, %54 : vector<4x16x16xf32>
    %cst_16 = arith.constant dense<0.000000e+00> : vector<4x16x8xf32>
    %56 = tpu.matmul %55, %35, %cst_16 {dimension_numbers = #tpu.dot_dimension_numbers<[2], [1], [1], [2], [0, 0, 0, 1, 1, 2], [0], [0]>} : vector<4x16x16xf32>, vector<4x16x8xf32>, vector<4x16x8xf32> -> vector<4x16x8xf32>
    %57 = vector.extract_strided_slice %56 {offsets = [0, 0, 0], sizes = [1, 16, 8], strides = [1, 1, 1]} : vector<4x16x8xf32> to vector<1x16x8xf32>
    %58 = vector.shape_cast %57 : vector<1x16x8xf32> to vector<16x8xf32>
    %59 = vector.extract_strided_slice %56 {offsets = [1, 0, 0], sizes = [1, 16, 8], strides = [1, 1, 1]} : vector<4x16x8xf32> to vector<1x16x8xf32>
    %60 = vector.shape_cast %59 : vector<1x16x8xf32> to vector<16x8xf32>
    %61 = vector.extract_strided_slice %56 {offsets = [2, 0, 0], sizes = [1, 16, 8], strides = [1, 1, 1]} : vector<4x16x8xf32> to vector<1x16x8xf32>
    %62 = vector.shape_cast %61 : vector<1x16x8xf32> to vector<16x8xf32>
    %63 = vector.extract_strided_slice %56 {offsets = [3, 0, 0], sizes = [1, 16, 8], strides = [1, 1, 1]} : vector<4x16x8xf32> to vector<1x16x8xf32>
    %64 = vector.shape_cast %63 : vector<1x16x8xf32> to vector<16x8xf32>
    %65 = tpu.concatenate %58, %60, %62, %64 in 1 : vector<16x8xf32>, vector<16x8xf32>, vector<16x8xf32>, vector<16x8xf32> -> vector<16x32xf32>
    %66 = vector.extract_strided_slice %6 {offsets = [16, 0], sizes = [16, 8], strides = [1, 1]} : vector<32x32xf32> to vector<16x8xf32>
    %67 = vector.extract_strided_slice %6 {offsets = [16, 8], sizes = [16, 8], strides = [1, 1]} : vector<32x32xf32> to vector<16x8xf32>
    %68 = vector.extract_strided_slice %6 {offsets = [16, 16], sizes = [16, 8], strides = [1, 1]} : vector<32x32xf32> to vector<16x8xf32>
    %69 = vector.extract_strided_slice %6 {offsets = [16, 24], sizes = [16, 8], strides = [1, 1]} : vector<32x32xf32> to vector<16x8xf32>
    %70 = vector.shape_cast %66 : vector<16x8xf32> to vector<1x16x8xf32>
    %71 = vector.shape_cast %67 : vector<16x8xf32> to vector<1x16x8xf32>
    %72 = vector.shape_cast %68 : vector<16x8xf32> to vector<1x16x8xf32>
    %73 = vector.shape_cast %69 : vector<16x8xf32> to vector<1x16x8xf32>
    %74 = tpu.concatenate %70, %71, %72, %73 in 0 : vector<1x16x8xf32>, vector<1x16x8xf32>, vector<1x16x8xf32>, vector<1x16x8xf32> -> vector<4x16x8xf32>
    %75 = vector.extract_strided_slice %7 {offsets = [16, 0], sizes = [16, 8], strides = [1, 1]} : vector<32x32xf32> to vector<16x8xf32>
    %76 = vector.extract_strided_slice %7 {offsets = [16, 8], sizes = [16, 8], strides = [1, 1]} : vector<32x32xf32> to vector<16x8xf32>
    %77 = vector.extract_strided_slice %7 {offsets = [16, 16], sizes = [16, 8], strides = [1, 1]} : vector<32x32xf32> to vector<16x8xf32>
    %78 = vector.extract_strided_slice %7 {offsets = [16, 24], sizes = [16, 8], strides = [1, 1]} : vector<32x32xf32> to vector<16x8xf32>
    %79 = vector.shape_cast %75 : vector<16x8xf32> to vector<1x16x8xf32>
    %80 = vector.shape_cast %76 : vector<16x8xf32> to vector<1x16x8xf32>
    %81 = vector.shape_cast %77 : vector<16x8xf32> to vector<1x16x8xf32>
    %82 = vector.shape_cast %78 : vector<16x8xf32> to vector<1x16x8xf32>
    %83 = tpu.concatenate %79, %80, %81, %82 in 0 : vector<1x16x8xf32>, vector<1x16x8xf32>, vector<1x16x8xf32>, vector<1x16x8xf32> -> vector<4x16x8xf32>
    %84 = vector.extract_strided_slice %8 {offsets = [16, 0], sizes = [16, 8], strides = [1, 1]} : vector<32x32xf32> to vector<16x8xf32>
    %85 = vector.extract_strided_slice %8 {offsets = [16, 8], sizes = [16, 8], strides = [1, 1]} : vector<32x32xf32> to vector<16x8xf32>
    %86 = vector.extract_strided_slice %8 {offsets = [16, 16], sizes = [16, 8], strides = [1, 1]} : vector<32x32xf32> to vector<16x8xf32>
    %87 = vector.extract_strided_slice %8 {offsets = [16, 24], sizes = [16, 8], strides = [1, 1]} : vector<32x32xf32> to vector<16x8xf32>
    %88 = vector.shape_cast %84 : vector<16x8xf32> to vector<1x16x8xf32>
    %89 = vector.shape_cast %85 : vector<16x8xf32> to vector<1x16x8xf32>
    %90 = vector.shape_cast %86 : vector<16x8xf32> to vector<1x16x8xf32>
    %91 = vector.shape_cast %87 : vector<16x8xf32> to vector<1x16x8xf32>
    %92 = tpu.concatenate %88, %89, %90, %91 in 0 : vector<1x16x8xf32>, vector<1x16x8xf32>, vector<1x16x8xf32>, vector<1x16x8xf32> -> vector<4x16x8xf32>
    %cst_17 = arith.constant dense<0.000000e+00> : vector<4x16x16xf32>
    %93 = tpu.matmul %74, %83, %cst_17 {dimension_numbers = #tpu.dot_dimension_numbers<[2], [2], [1], [1], [0, 0, 0, 1, 1, 1], [0], [0]>} : vector<4x16x8xf32>, vector<4x16x8xf32>, vector<4x16x16xf32> -> vector<4x16x16xf32>
    %c1 = arith.constant 1 : index
    %c0_18 = arith.constant 0 : index
    %c0_19 = arith.constant 0 : index
    %c0_20 = arith.constant 0 : index
    %94 = vector.load %arg16[%c1, %c0_18, %c0_19, %c0_20] : memref<2x4x16x16xf32, #tpu.memory_space<vmem>>, vector<1x4x16x16xf32>
    %95 = vector.shape_cast %94 : vector<1x4x16x16xf32> to vector<4x16x16xf32>
    %96 = vector.shape_cast %93 : vector<4x16x16xf32> to vector<1x4x16x16xf32>
    tpu.vector_store %arg16[%c1, %c0_18, %c0_19, %c0_20], %96 {strides = array<i32>} : memref<2x4x16x16xf32, #tpu.memory_space<vmem>>, vector<1x4x16x16xf32>,
    %c0_21 = arith.constant 0 : index
    %c0_22 = arith.constant 0 : index
    %97 = vector.load %arg2[%c0_21, %c0_22] : memref<16x16xf32, #tpu.memory_space<vmem>>, vector<16x16xf32>
    %cst_23 = arith.constant 0.000000e+00 : f32
    %98 = vector.broadcast %cst_23 : f32 to vector<16x16xf32>
    %99 = arith.cmpf ogt, %97, %98 : vector<16x16xf32>
    %cst_24 = arith.constant -4.2949673E+9 : f32
    %100 = vector.shape_cast %99 : vector<16x16xi1> to vector<1x16x16xi1>
    %101 = vector.broadcast %100 : vector<1x16x16xi1> to vector<4x16x16xi1>
    %102 = vector.broadcast %cst_24 : f32 to vector<4x16x16xf32>
    %103 = arith.select %101, %93, %102 : vector<4x16x16xi1>, vector<4x16x16xf32>
    %cst_25 = arith.constant dense<0xFF800000> : vector<4x16xf32>
    %104 = vector.multi_reduction <maximumf>, %103, %cst_25 [2] : vector<4x16x16xf32> to vector<4x16xf32>
    %105 = vector.shape_cast %104 : vector<4x16xf32> to vector<4x16x1xf32>
    %106 = vector.broadcast %105 : vector<4x16x1xf32> to vector<4x16x16xf32>
    %107 = arith.subf %103, %106 : vector<4x16x16xf32>
    %108 = math.exp %107 : vector<4x16x16xf32>
    %cst_26 = arith.constant dense<0.000000e+00> : vector<4x16xf32>
    %109 = vector.multi_reduction <add>, %108, %cst_26 [2] : vector<4x16x16xf32> to vector<4x16xf32>
    %110 = vector.shape_cast %109 : vector<4x16xf32> to vector<4x16x1xf32>
    %111 = vector.broadcast %110 : vector<4x16x1xf32> to vector<4x16x16xf32>
    %112 = arith.divf %108, %111 : vector<4x16x16xf32>
    %cst_27 = arith.constant dense<0.000000e+00> : vector<4x16x8xf32>
    %113 = tpu.matmul %112, %92, %cst_27 {dimension_numbers = #tpu.dot_dimension_numbers<[2], [1], [1], [2], [0, 0, 0, 1, 1, 2], [0], [0]>} : vector<4x16x16xf32>, vector<4x16x8xf32>, vector<4x16x8xf32> -> vector<4x16x8xf32>
    %114 = vector.extract_strided_slice %113 {offsets = [0, 0, 0], sizes = [1, 16, 8], strides = [1, 1, 1]} : vector<4x16x8xf32> to vector<1x16x8xf32>
    %115 = vector.shape_cast %114 : vector<1x16x8xf32> to vector<16x8xf32>
    %116 = vector.extract_strided_slice %113 {offsets = [1, 0, 0], sizes = [1, 16, 8], strides = [1, 1, 1]} : vector<4x16x8xf32> to vector<1x16x8xf32>
    %117 = vector.shape_cast %116 : vector<1x16x8xf32> to vector<16x8xf32>
    %118 = vector.extract_strided_slice %113 {offsets = [2, 0, 0], sizes = [1, 16, 8], strides = [1, 1, 1]} : vector<4x16x8xf32> to vector<1x16x8xf32>
    %119 = vector.shape_cast %118 : vector<1x16x8xf32> to vector<16x8xf32>
    %120 = vector.extract_strided_slice %113 {offsets = [3, 0, 0], sizes = [1, 16, 8], strides = [1, 1, 1]} : vector<4x16x8xf32> to vector<1x16x8xf32>
    %121 = vector.shape_cast %120 : vector<1x16x8xf32> to vector<16x8xf32>
    %122 = tpu.concatenate %115, %117, %119, %121 in 1 : vector<16x8xf32>, vector<16x8xf32>, vector<16x8xf32>, vector<16x8xf32> -> vector<16x32xf32>
    %123 = tpu.concatenate %65, %122 in 0 : vector<16x32xf32>, vector<16x32xf32> -> vector<32x32xf32>
    %c0_28 = arith.constant 0 : index
    %c0_29 = arith.constant 0 : index
    %124 = vector.load %arg5[%c0_28, %c0_29] : memref<32x32xf32, #tpu.memory_space<vmem>>, vector<32x32xf32>
    %cst_30 = arith.constant dense<0.000000e+00> : vector<32x32xf32>
    %125 = tpu.matmul %123, %124, %cst_30 {dimension_numbers = #tpu.dot_dimension_numbers<[1], [0], [0], [1], [0, 0, 1, 1], [], []>} : vector<32x32xf32>, vector<32x32xf32>, vector<32x32xf32> -> vector<32x32xf32>
    %c0_31 = arith.constant 0 : index
    %c0_32 = arith.constant 0 : index
    %126 = vector.load %arg6[%c0_31, %c0_32] : memref<1x32xf32, #tpu.memory_space<vmem>>, vector<1x32xf32>
    %127 = vector.broadcast %126 : vector<1x32xf32> to vector<32x32xf32>
    %128 = arith.addf %125, %127 : vector<32x32xf32>
    %129 = arith.addf %128, %0 : vector<32x32xf32>
    %c0_33 = arith.constant 0 : index
    %c0_34 = arith.constant 0 : index
    %130 = vector.load %arg7[%c0_33, %c0_34] : memref<1x32xf32, #tpu.memory_space<vmem>>, vector<1x32xf32>
    %c0_35 = arith.constant 0 : index
    %c0_36 = arith.constant 0 : index
    %131 = vector.load %arg8[%c0_35, %c0_36] : memref<1x32xf32, #tpu.memory_space<vmem>>, vector<1x32xf32>
    %cst_37 = arith.constant dense<0.000000e+00> : vector<32xf32>
    %132 = vector.multi_reduction <add>, %129, %cst_37 [1] : vector<32x32xf32> to vector<32xf32>
    %133 = vector.shape_cast %132 : vector<32xf32> to vector<32x1xf32>
    %cst_38 = arith.constant 3.200000e+01 : f32
    %134 = vector.broadcast %cst_38 : f32 to vector<32x1xf32>
    %135 = arith.divf %133, %134 : vector<32x1xf32>
    %136 = vector.broadcast %135 : vector<32x1xf32> to vector<32x32xf32>
    %137 = arith.subf %129, %136 : vector<32x32xf32>
    %138 = arith.mulf %137, %137 : vector<32x32xf32>
    %cst_39 = arith.constant dense<0.000000e+00> : vector<32xf32>
    %139 = vector.multi_reduction <add>, %138, %cst_39 [1] : vector<32x32xf32> to vector<32xf32>
    %140 = vector.shape_cast %139 : vector<32xf32> to vector<32x1xf32>
    %cst_40 = arith.constant 3.200000e+01 : f32
    %141 = vector.broadcast %cst_40 : f32 to vector<32x1xf32>
    %142 = arith.divf %140, %141 : vector<32x1xf32>
    %143 = vector.broadcast %135 : vector<32x1xf32> to vector<32x32xf32>
    %144 = arith.subf %129, %143 : vector<32x32xf32>
    %cst_41 = arith.constant 9.99999974E-6 : f32
    %145 = vector.broadcast %cst_41 : f32 to vector<32x1xf32>
    %146 = arith.addf %142, %145 : vector<32x1xf32>
    %147 = math.rsqrt %146 : vector<32x1xf32>
    %148 = vector.broadcast %147 : vector<32x1xf32> to vector<32x32xf32>
    %149 = arith.mulf %144, %148 : vector<32x32xf32>
    %150 = vector.broadcast %130 : vector<1x32xf32> to vector<32x32xf32>
    %151 = arith.mulf %149, %150 : vector<32x32xf32>
    %152 = vector.broadcast %131 : vector<1x32xf32> to vector<32x32xf32>
    %153 = arith.addf %151, %152 : vector<32x32xf32>
    %c0_42 = arith.constant 0 : index
    %c0_43 = arith.constant 0 : index
    %154 = vector.load %arg9[%c0_42, %c0_43] : memref<32x64xf32, #tpu.memory_space<vmem>>, vector<32x64xf32>
    %cst_44 = arith.constant dense<0.000000e+00> : vector<32x64xf32>
    %155 = tpu.matmul %153, %154, %cst_44 {dimension_numbers = #tpu.dot_dimension_numbers<[1], [0], [0], [1], [0, 0, 1, 1], [], []>} : vector<32x32xf32>, vector<32x64xf32>, vector<32x64xf32> -> vector<32x64xf32>
    %c0_45 = arith.constant 0 : index
    %c0_46 = arith.constant 0 : index
    %156 = vector.load %arg10[%c0_45, %c0_46] : memref<1x64xf32, #tpu.memory_space<vmem>>, vector<1x64xf32>
    %157 = vector.broadcast %156 : vector<1x64xf32> to vector<32x64xf32>
    %158 = arith.addf %155, %157 : vector<32x64xf32>
    %cst_47 = arith.constant 0.000000e+00 : f32
    %159 = vector.broadcast %cst_47 : f32 to vector<32x64xf32>
    %160 = arith.maximumf %158, %159 : vector<32x64xf32>
    %c0_48 = arith.constant 0 : index
    %c0_49 = arith.constant 0 : index
    %161 = vector.load %arg11[%c0_48, %c0_49] : memref<64x32xf32, #tpu.memory_space<vmem>>, vector<64x32xf32>
    %cst_50 = arith.constant dense<0.000000e+00> : vector<32x32xf32>
    %162 = tpu.matmul %160, %161, %cst_50 {dimension_numbers = #tpu.dot_dimension_numbers<[1], [0], [0], [1], [0, 0, 1, 1], [], []>} : vector<32x64xf32>, vector<64x32xf32>, vector<32x32xf32> -> vector<32x32xf32>
    %c0_51 = arith.constant 0 : index
    %c0_52 = arith.constant 0 : index
    %163 = vector.load %arg12[%c0_51, %c0_52] : memref<1x32xf32, #tpu.memory_space<vmem>>, vector<1x32xf32>
    %164 = vector.broadcast %163 : vector<1x32xf32> to vector<32x32xf32>
    %165 = arith.addf %162, %164 : vector<32x32xf32>
    %166 = arith.addf %165, %153 : vector<32x32xf32>
    %c0_53 = arith.constant 0 : index
    %c0_54 = arith.constant 0 : index
    %167 = vector.load %arg13[%c0_53, %c0_54] : memref<1x32xf32, #tpu.memory_space<vmem>>, vector<1x32xf32>
    %c0_55 = arith.constant 0 : index
    %c0_56 = arith.constant 0 : index
    %168 = vector.load %arg14[%c0_55, %c0_56] : memref<1x32xf32, #tpu.memory_space<vmem>>, vector<1x32xf32>
    %cst_57 = arith.constant dense<0.000000e+00> : vector<32xf32>
    %169 = vector.multi_reduction <add>, %166, %cst_57 [1] : vector<32x32xf32> to vector<32xf32>
    %170 = vector.shape_cast %169 : vector<32xf32> to vector<32x1xf32>
    %cst_58 = arith.constant 3.200000e+01 : f32
    %171 = vector.broadcast %cst_58 : f32 to vector<32x1xf32>
    %172 = arith.divf %170, %171 : vector<32x1xf32>
    %173 = vector.broadcast %172 : vector<32x1xf32> to vector<32x32xf32>
    %174 = arith.subf %166, %173 : vector<32x32xf32>
    %175 = arith.mulf %174, %174 : vector<32x32xf32>
    %cst_59 = arith.constant dense<0.000000e+00> : vector<32xf32>
    %176 = vector.multi_reduction <add>, %175, %cst_59 [1] : vector<32x32xf32> to vector<32xf32>
    %177 = vector.shape_cast %176 : vector<32xf32> to vector<32x1xf32>
    %cst_60 = arith.constant 3.200000e+01 : f32
    %178 = vector.broadcast %cst_60 : f32 to vector<32x1xf32>
    %179 = arith.divf %177, %178 : vector<32x1xf32>
    %180 = vector.broadcast %172 : vector<32x1xf32> to vector<32x32xf32>
    %181 = arith.subf %166, %180 : vector<32x32xf32>
    %cst_61 = arith.constant 9.99999974E-6 : f32
    %182 = vector.broadcast %cst_61 : f32 to vector<32x1xf32>
    %183 = arith.addf %179, %182 : vector<32x1xf32>
    %184 = math.rsqrt %183 : vector<32x1xf32>
    %185 = vector.broadcast %184 : vector<32x1xf32> to vector<32x32xf32>
    %186 = arith.mulf %181, %185 : vector<32x32xf32>
    %187 = vector.broadcast %167 : vector<1x32xf32> to vector<32x32xf32>
    %188 = arith.mulf %186, %187 : vector<32x32xf32>
    %189 = vector.broadcast %168 : vector<1x32xf32> to vector<32x32xf32>
    %190 = arith.addf %188, %189 : vector<32x32xf32>
    %c0_62 = arith.constant 0 : index
    %c0_63 = arith.constant 0 : index
    %191 = vector.load %arg15[%c0_62, %c0_63] : memref<32x32xf32, #tpu.memory_space<vmem>>, vector<32x32xf32>
    tpu.vector_store %arg15[%c0_62, %c0_63], %190 {strides = array<i32>} : memref<32x32xf32, #tpu.memory_space<vmem>>, vector<32x32xf32>,
    return
  }
  func.func @transform_0(%arg0: i32) -> (i32, i32) {
    %c0_i32 = arith.constant 0 : i32
    %c0_i32_0 = arith.constant 0 : i32
    %c0_i32_1 = arith.constant 0 : i32
    return %c0_i32, %c0_i32_0 : i32, i32
  }
  func.func @transform_1(%arg0: i32) -> (i32, i32) {
    %c0_i32 = arith.constant 0 : i32
    %c0_i32_0 = arith.constant 0 : i32
    %c0_i32_1 = arith.constant 0 : i32
    return %c0_i32, %c0_i32_0 : i32, i32
  }
  func.func @transform_2(%arg0: i32) -> (i32, i32) {
    %c0_i32 = arith.constant 0 : i32
    %c0_i32_0 = arith.constant 0 : i32
    %c0_i32_1 = arith.constant 0 : i32
    return %c0_i32, %c0_i32_0 : i32, i32
  }
  func.func @transform_3(%arg0: i32) -> (i32, i32) {
    %c0_i32 = arith.constant 0 : i32
    %c0_i32_0 = arith.constant 0 : i32
    %c0_i32_1 = arith.constant 0 : i32
    return %c0_i32, %c0_i32_0 : i32, i32
  }
  func.func @transform_4(%arg0: i32) -> (i32, i32) {
    %c0_i32 = arith.constant 0 : i32
    %c0_i32_0 = arith.constant 0 : i32
    %c0_i32_1 = arith.constant 0 : i32
    return %c0_i32, %c0_i32_0 : i32, i32
  }
  func.func @transform_5(%arg0: i32) -> (i32, i32) {
    %c0_i32 = arith.constant 0 : i32
    %c0_i32_0 = arith.constant 0 : i32
    %c0_i32_1 = arith.constant 0 : i32
    return %c0_i32, %c0_i32_0 : i32, i32
  }
  func.func @transform_6(%arg0: i32) -> (i32, i32) {
    %c0_i32 = arith.constant 0 : i32
    %c0_i32_0 = arith.constant 0 : i32
    %c0_i32_1 = arith.constant 0 : i32
    return %c0_i32, %c0_i32_0 : i32, i32
  }
  func.func @transform_7(%arg0: i32) -> (i32, i32) {
    %c0_i32 = arith.constant 0 : i32
    %c0_i32_0 = arith.constant 0 : i32
    %c0_i32_1 = arith.constant 0 : i32
    return %c0_i32, %c0_i32_0 : i32, i32
  }
  func.func @transform_8(%arg0: i32) -> (i32, i32) {
    %c0_i32 = arith.constant 0 : i32
    %c0_i32_0 = arith.constant 0 : i32
    %c0_i32_1 = arith.constant 0 : i32
    return %c0_i32, %c0_i32_0 : i32, i32
  }
  func.func @transform_9(%arg0: i32) -> (i32, i32) {
    %c0_i32 = arith.constant 0 : i32
    %c0_i32_0 = arith.constant 0 : i32
    %c0_i32_1 = arith.constant 0 : i32
    return %c0_i32, %c0_i32_0 : i32, i32
  }
  func.func @transform_10(%arg0: i32) -> (i32, i32) {
    %c0_i32 = arith.constant 0 : i32
    %c0_i32_0 = arith.constant 0 : i32
    %c0_i32_1 = arith.constant 0 : i32
    return %c0_i32, %c0_i32_0 : i32, i32
  }
  func.func @transform_11(%arg0: i32) -> (i32, i32) {
    %c0_i32 = arith.constant 0 : i32
    %c0_i32_0 = arith.constant 0 : i32
    %c0_i32_1 = arith.constant 0 : i32
    return %c0_i32, %c0_i32_0 : i32, i32
  }
  func.func @transform_12(%arg0: i32) -> (i32, i32) {
    %c0_i32 = arith.constant 0 : i32
    %c0_i32_0 = arith.constant 0 : i32
    %c0_i32_1 = arith.constant 0 : i32
    return %c0_i32, %c0_i32_0 : i32, i32
  }
  func.func @transform_13(%arg0: i32) -> (i32, i32) {
    %c0_i32 = arith.constant 0 : i32
    %c0_i32_0 = arith.constant 0 : i32
    %c0_i32_1 = arith.constant 0 : i32
    return %c0_i32, %c0_i32_0 : i32, i32
  }
  func.func @transform_14(%arg0: i32) -> (i32, i32) {
    %c0_i32 = arith.constant 0 : i32
    %c0_i32_0 = arith.constant 0 : i32
    %c0_i32_1 = arith.constant 0 : i32
    return %c0_i32, %c0_i32_0 : i32, i32
  }
  func.func @transform_15(%arg0: i32) -> (i32, i32, i32, i32) {
    %c0_i32 = arith.constant 0 : i32
    %c0_i32_0 = arith.constant 0 : i32
    %c0_i32_1 = arith.constant 0 : i32
    %c0_i32_2 = arith.constant 0 : i32
    %c0_i32_3 = arith.constant 0 : i32
    return %c0_i32, %c0_i32_0, %c0_i32_1, %c0_i32_2 : i32, i32, i32, i32
  }
}

</mosaic_0001>

<llo_original>
// kernel: encoder_forward.1
$region0: #{encoder_forward.1}
  #allocation0 [shape = 'u32[]', space=smem, size = 0x4, offset = 0x4, fixed_abs, tag = 'smem constant byte address 0x4 - core index']
  #allocation1 [shape = 'u32[144,128]{1,0:T(1,128)}', space=vmem, size = 0x12000, scoped, tag = 'internal scratch']
  %s0 = inlined_call_operand.vmem [shape: f32[32,32], index: 0, kind: input, shape index: {}]
  %s1 = inlined_call_operand.vmem [shape: f32[16,16], index: 1, kind: input, shape index: {}]
  %s2 = inlined_call_operand.vmem [shape: f32[32,96], index: 2, kind: input, shape index: {}]
  %s3 = inlined_call_operand.vmem [shape: f32[1,96], index: 3, kind: input, shape index: {}]
  %s4 = inlined_call_operand.vmem [shape: f32[32,32], index: 4, kind: input, shape index: {}]
  %s5 = inlined_call_operand.vmem [shape: f32[1,32], index: 5, kind: input, shape index: {}]
  %s6 = inlined_call_operand.vmem [shape: f32[1,32], index: 6, kind: input, shape index: {}]
  %s7 = inlined_call_operand.vmem [shape: f32[1,32], index: 7, kind: input, shape index: {}]
  %s8 = inlined_call_operand.vmem [shape: f32[32,64], index: 8, kind: input, shape index: {}]
  %s9 = inlined_call_operand.vmem [shape: f32[1,64], index: 9, kind: input, shape index: {}]
  %s10 = inlined_call_operand.vmem [shape: f32[64,32], index: 10, kind: input, shape index: {}]
  %s11 = inlined_call_operand.vmem [shape: f32[1,32], index: 11, kind: input, shape index: {}]
  %s12 = inlined_call_operand.vmem [shape: f32[1,32], index: 12, kind: input, shape index: {}]
  %s13 = inlined_call_operand.vmem [shape: f32[1,32], index: 13, kind: input, shape index: {}]
  %s14 = inlined_call_operand.hbm [shape: f32[32,32], index: 14, kind: output, shape index: {0}]
  %s15 = inlined_call_operand.vmem [shape: f32[2,4,16,16], index: 15, kind: output, shape index: {1}]
  %16 = xla_tuple %s14, %s15
  %s17 = sld [smem:[#allocation0]]
  $region74: #{encoder_forward.1} parent=0
    _
  %s19 = ssub.s32 1, %s17
  %s20 = scalar_select 0, %s19, %s17
  $region1: #{encoder_forward.1} parent=0
    #allocation2 [shape = 'u8[16384]{0}', space=vmem, size = 0x4000, scoped, tag = 'output window, operand 0, single buffered']
    #allocation3 [shape = 's32[1]{0}', space=sflag, size = 0x4, scoped, tag = 'scoped memory for encoder_forward.1']
    %21 = vsyncpa [#allocation3], 0
    // Predicated region
    $region2: #{encoder_forward.1} parent=1 // pred_check
      _
    $region3: #{encoder_forward.1} parent=1 // pred_check_branch
      %23 = sbr.rel (0) target = $region5
    $region4: #{encoder_forward.1} parent=1 // pred_region
      _
    $region5: #{encoder_forward.1} parent=1 // pred_fallthru
      _
    // Predicated region
    $region6: #{encoder_forward.1} parent=1 // pred_check
      _
    $region7: #{encoder_forward.1} parent=1 // pred_check_branch
      %25 = sbr.rel (0) target = $region9
    $region8: #{encoder_forward.1} parent=1 // pred_region
      _
    $region9: #{encoder_forward.1} parent=1 // pred_fallthru
      _
    // Predicated region
    $region10: #{encoder_forward.1} parent=1 // pred_check
      _
    $region11: #{encoder_forward.1} parent=1 // pred_check_branch
      %27 = sbr.rel (0) target = $region13
    $region12: #{encoder_forward.1} parent=1 // pred_region
      _
    $region13: #{encoder_forward.1} parent=1 // pred_fallthru
      _
    // Predicated region
    $region14: #{encoder_forward.1} parent=1 // pred_check
      _
    $region15: #{encoder_forward.1} parent=1 // pred_check_branch
      %29 = sbr.rel (0) target = $region17
    $region16: #{encoder_forward.1} parent=1 // pred_region
      _
    $region17: #{encoder_forward.1} parent=1 // pred_fallthru
      _
    // Predicated region
    $region18: #{encoder_forward.1} parent=1 // pred_check
      _
    $region19: #{encoder_forward.1} parent=1 // pred_check_branch
      %31 = sbr.rel (0) target = $region21
    $region20: #{encoder_forward.1} parent=1 // pred_region
      _
    $region21: #{encoder_forward.1} parent=1 // pred_fallthru
      _
    // Predicated region
    $region22: #{encoder_forward.1} parent=1 // pred_check
      _
    $region23: #{encoder_forward.1} parent=1 // pred_check_branch
      %33 = sbr.rel (0) target = $region25
    $region24: #{encoder_forward.1} parent=1 // pred_region
      _
    $region25: #{encoder_forward.1} parent=1 // pred_fallthru
      _
    // Predicated region
    $region26: #{encoder_forward.1} parent=1 // pred_check
      _
    $region27: #{encoder_forward.1} parent=1 // pred_check_branch
      %35 = sbr.rel (0) target = $region29
    $region28: #{encoder_forward.1} parent=1 // pred_region
      _
    $region29: #{encoder_forward.1} parent=1 // pred_fallthru
      _
    // Predicated region
    $region30: #{encoder_forward.1} parent=1 // pred_check
      _
    $region31: #{encoder_forward.1} parent=1 // pred_check_branch
      %37 = sbr.rel (0) target = $region33
    $region32: #{encoder_forward.1} parent=1 // pred_region
      _
    $region33: #{encoder_forward.1} parent=1 // pred_fallthru
      _
    // Predicated region
    $region34: #{encoder_forward.1} parent=1 // pred_check
      _
    $region35: #{encoder_forward.1} parent=1 // pred_check_branch
      %39 = sbr.rel (0) target = $region37
    $region36: #{encoder_forward.1} parent=1 // pred_region
      _
    $region37: #{encoder_forward.1} parent=1 // pred_fallthru
      _
    // Predicated region
    $region38: #{encoder_forward.1} parent=1 // pred_check
      _
    $region39: #{encoder_forward.1} parent=1 // pred_check_branch
      %41 = sbr.rel (0) target = $region41
    $region40: #{encoder_forward.1} parent=1 // pred_region
      _
    $region41: #{encoder_forward.1} parent=1 // pred_fallthru
      _
    // Predicated region
    $region42: #{encoder_forward.1} parent=1 // pred_check
      _
    $region43: #{encoder_forward.1} parent=1 // pred_check_branch
      %43 = sbr.rel (0) target = $region45
    $region44: #{encoder_forward.1} parent=1 // pred_region
      _
    $region45: #{encoder_forward.1} parent=1 // pred_fallthru
      _
    // Predicated region
    $region46: #{encoder_forward.1} parent=1 // pred_check
      _
    $region47: #{encoder_forward.1} parent=1 // pred_check_branch
      %45 = sbr.rel (0) target = $region49
    $region48: #{encoder_forward.1} parent=1 // pred_region
      _
    $region49: #{encoder_forward.1} parent=1 // pred_fallthru
      _
    // Predicated region
    $region50: #{encoder_forward.1} parent=1 // pred_check
      _
    $region51: #{encoder_forward.1} parent=1 // pred_check_branch
      %47 = sbr.rel (0) target = $region53
    $region52: #{encoder_forward.1} parent=1 // pred_region
      _
    $region53: #{encoder_forward.1} parent=1 // pred_fallthru
      _
    // Predicated region
    $region54: #{encoder_forward.1} parent=1 // pred_check
      _
    $region55: #{encoder_forward.1} parent=1 // pred_check_branch
      %49 = sbr.rel (0) target = $region57
    $region56: #{encoder_forward.1} parent=1 // pred_region
      _
    $region57: #{encoder_forward.1} parent=1 // pred_fallthru
      _
    %v50 = vld [vmem:[%s0] sm:$0xff]
    %v51 = vld [vmem:[%s0 + $0x8] sm:$0xff]
    %v52 = vld [vmem:[%s0 + $0x10] sm:$0xff]
    %v53 = vld [vmem:[%s0 + $0x18] sm:$0xff]
    %v54 = vld [vmem:[%s2] sm:$0xff]
    %v55 = vld [vmem:[%s2 + $0x8] sm:$0xff]
    %v56 = vld [vmem:[%s2 + $0x10] sm:$0xff]
    %v57 = vld [vmem:[%s2 + $0x18] sm:$0xff]
    %v58 = vld [vmem:[%s3] sm:$0x1]
    %v60 = vlaneseq
    %v61 = vshrl.u32 %v60, 7
    %v62 = vsub.s32 0, %v61
    %v63 = vrot.slane %v58, %v62
    %vm65 = vcmask 261120
    %v67 = vsel %vm65, %v50, 0
    %v70 = vsel %vm65, %v51, 0
    %v73 = vsel %vm65, %v52, 0
    %v76 = vsel %vm65, %v53, 0
    %78 = vmatprep.subr.mxu0 0.0
    %79 = vmatpush1.msra.mxu0 %v54
    %80 = vmatprep.subr.mxu0 0.0
    %81 = vmatpush1.msra.mxu0 %v55
    %82 = vmatprep.subr.mxu0 0.0
    %83 = vmatpush1.msra.mxu0 %v56
    %84 = vmatprep.subr.mxu0 0.0
    %85 = vmatpush1.msra.mxu0 %v57
    %86 = vmatprep.subr.mxu0 0.0
    %87 = vmatpush1.msra.mxu0 0.0
    %88 = vmatprep.subr.mxu0 0.0
    %89 = vmatpush1.msra.mxu0 0.0
    %90 = vmatprep.subr.mxu0 0.0
    %91 = vmatpush1.msra.mxu0 0.0
    %92 = vmatprep.subr.mxu0 0.0
    %93 = vmatpush1.msra.mxu0 0.0
    %94 = vmatprep.subr.mxu0 0.0
    %95 = vmatpush1.msra.mxu0 0.0
    %96 = vmatprep.subr.mxu0 0.0
    %97 = vmatpush1.msra.mxu0 0.0
    %98 = vmatprep.subr.mxu0 0.0
    %99 = vmatpush1.msra.mxu0 0.0
    %100 = vmatprep.subr.mxu0 0.0
    %101 = vmatpush1.msra.mxu0 0.0
    %102 = vmatprep.subr.mxu0 0.0
    %103 = vmatpush1.msra.mxu0 0.0
    %104 = vmatprep.subr.mxu0 0.0
    %105 = vmatpush1.msra.mxu0 0.0
    %106 = vmatprep.subr.mxu0 0.0
    %107 = vmatpush1.msra.mxu0 0.0
    %108 = vmatprep.subr.mxu0 0.0
    %109 = vmatpush1.msra.mxu0 0.0
    %110 = vmatprep.subr.mxu0 0.0
    %111 = vmatpush1.msra.mxu0 0.0
    %112 = vmatprep.subr.mxu0 0.0
    %113 = vmatpush1.msra.mxu0 0.0
    %114 = vmatprep.subr.mxu0 0.0
    %115 = vmatpush1.msra.mxu0 0.0
    %116 = vmatprep.subr.mxu0 0.0
    %117 = vmatpush1.msra.mxu0 0.0
    %118 = vmatprep.subr.mxu0 0.0
    %119 = vmatpush1.msra.mxu0 0.0
    %120 = vmatprep.subr.mxu0 0.0
    %121 = vmatpush1.msra.mxu0 0.0
    %122 = vmatprep.subr.mxu0 0.0
    %123 = vmatpush1.msra.mxu0 0.0
    %124 = vmatprep.subr.mxu0 0.0
    %125 = vmatpush1.msra.mxu0 0.0
    %126 = vmatprep.subr.mxu0 0.0
    %127 = vmatpush1.msra.mxu0 0.0
    %128 = vmatprep.subr.mxu0 0.0
    %129 = vmatpush1.msra.mxu0 0.0
    %130 = vmatprep.subr.mxu0 0.0
    %131 = vmatpush1.msra.mxu0 0.0
    %132 = vmatprep.subr.mxu0 0.0
    %133 = vmatpush1.msra.mxu0 0.0
    %134 = vmatprep.subr.mxu0 0.0
    %135 = vmatpush1.msra.mxu0 0.0
    %136 = vmatprep.subr.mxu0 0.0
    %137 = vmatpush1.msra.mxu0 0.0
    %138 = vmatprep.subr.mxu0 0.0
    %139 = vmatpush1.msra.mxu0 0.0
    %140 = vmatprep.subr.mxu0 0.0
    %141 = vmatpush1.msra.mxu0 0.0
    %142 = vmatprep.mubr.f32.mxu0 0.0
    %143 = vmatmul.mubr.f32.gmra.mrb[0].mxu0 %v67
    %v144 = vpop.f32.mrb[0].mxu0
    %v145 = vadd.f32 %v63, %v144
    %v146 = vpop.f32.mrb[0].mxu0
    %147 = vmatprep.mubr.f32.mxu0 0.0
    %148 = vmatmul.mubr.f32.gmra.mrb[0].mxu0 %v70
    %v149 = vpop.f32.mrb[0].mxu0
    %v150 = vadd.f32 %v63, %v149
    %v151 = vpop.f32.mrb[0].mxu0
    %152 = vmatprep.mubr.f32.mxu0 0.0
    %153 = vmatmul.mubr.f32.gmra.mrb[0].mxu0 %v73
    %v154 = vpop.f32.mrb[0].mxu0
    %v155 = vadd.f32 %v63, %v154
    %v156 = vpop.f32.mrb[0].mxu0
    %157 = vmatprep.mubr.f32.mxu0 0.0
    %158 = vmatmul.mubr.f32.gmra.mrb[0].mxu0 %v76
    %v159 = vpop.f32.mrb[0].mxu0
    %v160 = vadd.f32 %v63, %v159
    %v161 = vpop.f32.mrb[0].mxu0
    %162 = vdwg.mxu0
    %165 = vrot.lane.b32.xlu0 %v145, 120
    %v166 = vpop.permute.xlu0 %165
    %167 = vrot.lane.b32.xlu0 %v150, 120
    %v168 = vpop.permute.xlu0 %167
    %169 = vrot.lane.b32.xlu0 %v145, 112
    %v170 = vpop.permute.xlu0 %169
    %171 = vrot.lane.b32.xlu0 %v150, 112
    %v172 = vpop.permute.xlu0 %171
    %173 = vrot.lane.b32.xlu0 %v145, 104
    %v174 = vpop.permute.xlu0 %173
    %175 = vrot.lane.b32.xlu0 %v150, 104
    %v176 = vpop.permute.xlu0 %175
    %177 = vrot.lane.b32.xlu0 %v145, 96
    %v178 = vpop.permute.xlu0 %177
    %179 = vrot.lane.b32.xlu0 %v150, 96
    %v180 = vpop.permute.xlu0 %179
    %vm181 = vcmask 64512
    %v182 = vsel %vm181, %v145, 0
    %v184 = vsel %vm181, %v150, 0
    %v186 = vsel %vm181, %v178, 0
    %v188 = vsel %vm181, %v180, 0
    %190 = vmatprep.subr.mxu0 0.0
    %191 = vmatpush1.xpose.msra.mxu0 %v186
    %192 = vmatprep.subr.mxu0 0.0
    %193 = vmatpush1.xpose.msra.mxu0 %v188
    %194 = vmatprep.subr.mxu0 0.0
    %195 = vmatpush1.xpose.msra.mxu0 0.0
    %196 = vmatprep.subr.mxu0 0.0
    %197 = vmatpush1.xpose.msra.mxu0 0.0
    %198 = vmatprep.subr.mxu0 0.0
    %199 = vmatpush1.xpose.msra.mxu0 0.0
    %200 = vmatprep.subr.mxu0 0.0
    %201 = vmatpush1.xpose.msra.mxu0 0.0
    %202 = vmatprep.subr.mxu0 0.0
    %203 = vmatpush1.xpose.msra.mxu0 0.0
    %204 = vmatprep.subr.mxu0 0.0
    %205 = vmatpush1.xpose.msra.mxu0 0.0
    %206 = vmatprep.subr.mxu0 0.0
    %207 = vmatpush1.xpose.msra.mxu0 0.0
    %208 = vmatprep.subr.mxu0 0.0
    %209 = vmatpush1.xpose.msra.mxu0 0.0
    %210 = vmatprep.subr.mxu0 0.0
    %211 = vmatpush1.xpose.msra.mxu0 0.0
    %212 = vmatprep.subr.mxu0 0.0
    %213 = vmatpush1.xpose.msra.mxu0 0.0
    %214 = vmatprep.subr.mxu0 0.0
    %215 = vmatpush1.xpose.msra.mxu0 0.0
    %216 = vmatprep.subr.mxu0 0.0
    %217 = vmatpush1.xpose.msra.mxu0 0.0
    %218 = vmatprep.subr.mxu0 0.0
    %219 = vmatpush1.xpose.msra.mxu0 0.0
    %220 = vmatprep.subr.mxu0 0.0
    %221 = vmatpush1.xpose.msra.mxu0 0.0
    %222 = vmatprep.subr.mxu0 0.0
    %223 = vmatpush1.xpose.msra.mxu0 0.0
    %224 = vmatprep.subr.mxu0 0.0
    %225 = vmatpush1.xpose.msra.mxu0 0.0
    %226 = vmatprep.subr.mxu0 0.0
    %227 = vmatpush1.xpose.msra.mxu0 0.0
    %228 = vmatprep.subr.mxu0 0.0
    %229 = vmatpush1.xpose.msra.mxu0 0.0
    %230 = vmatprep.subr.mxu0 0.0
    %231 = vmatpush1.xpose.msra.mxu0 0.0
    %232 = vmatprep.subr.mxu0 0.0
    %233 = vmatpush1.xpose.msra.mxu0 0.0
    %234 = vmatprep.subr.mxu0 0.0
    %235 = vmatpush1.xpose.msra.mxu0 0.0
    %236 = vmatprep.subr.mxu0 0.0
    %237 = vmatpush1.xpose.msra.mxu0 0.0
    %238 = vmatprep.subr.mxu0 0.0
    %239 = vmatpush1.xpose.msra.mxu0 0.0
    %240 = vmatprep.subr.mxu0 0.0
    %241 = vmatpush1.xpose.msra.mxu0 0.0
    %242 = vmatprep.subr.mxu0 0.0
    %243 = vmatpush1.xpose.msra.mxu0 0.0
    %244 = vmatprep.subr.mxu0 0.0
    %245 = vmatpush1.xpose.msra.mxu0 0.0
    %246 = vmatprep.subr.mxu0 0.0
    %247 = vmatpush1.xpose.msra.mxu0 0.0
    %248 = vmatprep.subr.mxu0 0.0
    %249 = vmatpush1.xpose.msra.mxu0 0.0
    %250 = vmatprep.subr.mxu0 0.0
    %251 = vmatpush1.xpose.msra.mxu0 0.0
    %252 = vmatprep.subr.mxu0 0.0
    %253 = vmatpush1.xpose.msra.mxu0 0.0
    %254 = vmatprep.mubr.f32.mxu0 0.0
    %255 = vmatmul.mubr.f32.gmra.mrb[0].mxu0 %v182
    %v256 = vpop.f32.mrb[0].mxu0
    %v257 = vadd.f32 0.0, %v256
    %v258 = vpop.f32.mrb[0].mxu0
    %259 = vmatprep.mubr.f32.mxu0 0.0
    %260 = vmatmul.mubr.f32.gmra.mrb[0].mxu0 %v184
    %v261 = vpop.f32.mrb[0].mxu0
    %v262 = vadd.f32 0.0, %v261
    %v263 = vpop.f32.mrb[0].mxu0
    %264 = vdwg.mxu0
    %265 = vrot.lane.b32.xlu0 %v166, 96
    %v266 = vpop.permute.xlu0 %265
    %267 = vrot.lane.b32.xlu0 %v168, 96
    %v268 = vpop.permute.xlu0 %267
    %v269 = vsel %vm181, %v166, 0
    %v271 = vsel %vm181, %v168, 0
    %v273 = vsel %vm181, %v266, 0
    %v275 = vsel %vm181, %v268, 0
    %277 = vmatprep.subr.mxu0 0.0
    %278 = vmatpush1.xpose.msra.mxu0 %v273
    %279 = vmatprep.subr.mxu0 0.0
    %280 = vmatpush1.xpose.msra.mxu0 %v275
    %281 = vmatprep.subr.mxu0 0.0
    %282 = vmatpush1.xpose.msra.mxu0 0.0
    %283 = vmatprep.subr.mxu0 0.0
    %284 = vmatpush1.xpose.msra.mxu0 0.0
    %285 = vmatprep.subr.mxu0 0.0
    %286 = vmatpush1.xpose.msra.mxu0 0.0
    %287 = vmatprep.subr.mxu0 0.0
    %288 = vmatpush1.xpose.msra.mxu0 0.0
    %289 = vmatprep.subr.mxu0 0.0
    %290 = vmatpush1.xpose.msra.mxu0 0.0
    %291 = vmatprep.subr.mxu0 0.0
    %292 = vmatpush1.xpose.msra.mxu0 0.0
    %293 = vmatprep.subr.mxu0 0.0
    %294 = vmatpush1.xpose.msra.mxu0 0.0
    %295 = vmatprep.subr.mxu0 0.0
    %296 = vmatpush1.xpose.msra.mxu0 0.0
    %297 = vmatprep.subr.mxu0 0.0
    %298 = vmatpush1.xpose.msra.mxu0 0.0
    %299 = vmatprep.subr.mxu0 0.0
    %300 = vmatpush1.xpose.msra.mxu0 0.0
    %301 = vmatprep.subr.mxu0 0.0
    %302 = vmatpush1.xpose.msra.mxu0 0.0
    %303 = vmatprep.subr.mxu0 0.0
    %304 = vmatpush1.xpose.msra.mxu0 0.0
    %305 = vmatprep.subr.mxu0 0.0
    %306 = vmatpush1.xpose.msra.mxu0 0.0
    %307 = vmatprep.subr.mxu0 0.0
    %308 = vmatpush1.xpose.msra.mxu0 0.0
    %309 = vmatprep.subr.mxu0 0.0
    %310 = vmatpush1.xpose.msra.mxu0 0.0
    %311 = vmatprep.subr.mxu0 0.0
    %312 = vmatpush1.xpose.msra.mxu0 0.0
    %313 = vmatprep.subr.mxu0 0.0
    %314 = vmatpush1.xpose.msra.mxu0 0.0
    %315 = vmatprep.subr.mxu0 0.0
    %316 = vmatpush1.xpose.msra.mxu0 0.0
    %317 = vmatprep.subr.mxu0 0.0
    %318 = vmatpush1.xpose.msra.mxu0 0.0
    %319 = vmatprep.subr.mxu0 0.0
    %320 = vmatpush1.xpose.msra.mxu0 0.0
    %321 = vmatprep.subr.mxu0 0.0
    %322 = vmatpush1.xpose.msra.mxu0 0.0
    %323 = vmatprep.subr.mxu0 0.0
    %324 = vmatpush1.xpose.msra.mxu0 0.0
    %325 = vmatprep.subr.mxu0 0.0
    %326 = vmatpush1.xpose.msra.mxu0 0.0
    %327 = vmatprep.subr.mxu0 0.0
    %328 = vmatpush1.xpose.msra.mxu0 0.0
    %329 = vmatprep.subr.mxu0 0.0
    %330 = vmatpush1.xpose.msra.mxu0 0.0
    %331 = vmatprep.subr.mxu0 0.0
    %332 = vmatpush1.xpose.msra.mxu0 0.0
    %333 = vmatprep.subr.mxu0 0.0
    %334 = vmatpush1.xpose.msra.mxu0 0.0
    %335 = vmatprep.subr.mxu0 0.0
    %336 = vmatpush1.xpose.msra.mxu0 0.0
    %337 = vmatprep.subr.mxu0 0.0
    %338 = vmatpush1.xpose.msra.mxu0 0.0
    %339 = vmatprep.subr.mxu0 0.0
    %340 = vmatpush1.xpose.msra.mxu0 0.0
    %341 = vmatprep.mubr.f32.mxu0 0.0
    %342 = vmatmul.mubr.f32.gmra.mrb[0].mxu0 %v269
    %v343 = vpop.f32.mrb[0].mxu0
    %v344 = vadd.f32 0.0, %v343
    %v345 = vpop.f32.mrb[0].mxu0
    %346 = vmatprep.mubr.f32.mxu0 0.0
    %347 = vmatmul.mubr.f32.gmra.mrb[0].mxu0 %v271
    %v348 = vpop.f32.mrb[0].mxu0
    %v349 = vadd.f32 0.0, %v348
    %v350 = vpop.f32.mrb[0].mxu0
    %351 = vdwg.mxu0
    %352 = vrot.lane.b32.xlu0 %v170, 96
    %v353 = vpop.permute.xlu0 %352
    %354 = vrot.lane.b32.xlu0 %v172, 96
    %v355 = vpop.permute.xlu0 %354
    %v356 = vsel %vm181, %v170, 0
    %v358 = vsel %vm181, %v172, 0
    %v360 = vsel %vm181, %v353, 0
    %v362 = vsel %vm181, %v355, 0
    %364 = vmatprep.subr.mxu0 0.0
    %365 = vmatpush1.xpose.msra.mxu0 %v360
    %366 = vmatprep.subr.mxu0 0.0
    %367 = vmatpush1.xpose.msra.mxu0 %v362
    %368 = vmatprep.subr.mxu0 0.0
    %369 = vmatpush1.xpose.msra.mxu0 0.0
    %370 = vmatprep.subr.mxu0 0.0
    %371 = vmatpush1.xpose.msra.mxu0 0.0
    %372 = vmatprep.subr.mxu0 0.0
    %373 = vmatpush1.xpose.msra.mxu0 0.0
    %374 = vmatprep.subr.mxu0 0.0
    %375 = vmatpush1.xpose.msra.mxu0 0.0
    %376 = vmatprep.subr.mxu0 0.0
    %377 = vmatpush1.xpose.msra.mxu0 0.0
    %378 = vmatprep.subr.mxu0 0.0
    %379 = vmatpush1.xpose.msra.mxu0 0.0
    %380 = vmatprep.subr.mxu0 0.0
    %381 = vmatpush1.xpose.msra.mxu0 0.0
    %382 = vmatprep.subr.mxu0 0.0
    %383 = vmatpush1.xpose.msra.mxu0 0.0
    %384 = vmatprep.subr.mxu0 0.0
    %385 = vmatpush1.xpose.msra.mxu0 0.0
    %386 = vmatprep.subr.mxu0 0.0
    %387 = vmatpush1.xpose.msra.mxu0 0.0
    %388 = vmatprep.subr.mxu0 0.0
    %389 = vmatpush1.xpose.msra.mxu0 0.0
    %390 = vmatprep.subr.mxu0 0.0
    %391 = vmatpush1.xpose.msra.mxu0 0.0
    %392 = vmatprep.subr.mxu0 0.0
    %393 = vmatpush1.xpose.msra.mxu0 0.0
    %394 = vmatprep.subr.mxu0 0.0
    %395 = vmatpush1.xpose.msra.mxu0 0.0
    %396 = vmatprep.subr.mxu0 0.0
    %397 = vmatpush1.xpose.msra.mxu0 0.0
    %398 = vmatprep.subr.mxu0 0.0
    %399 = vmatpush1.xpose.msra.mxu0 0.0
    %400 = vmatprep.subr.mxu0 0.0
    %401 = vmatpush1.xpose.msra.mxu0 0.0
    %402 = vmatprep.subr.mxu0 0.0
    %403 = vmatpush1.xpose.msra.mxu0 0.0
    %404 = vmatprep.subr.mxu0 0.0
    %405 = vmatpush1.xpose.msra.mxu0 0.0
    %406 = vmatprep.subr.mxu0 0.0
    %407 = vmatpush1.xpose.msra.mxu0 0.0
    %408 = vmatprep.subr.mxu0 0.0
    %409 = vmatpush1.xpose.msra.mxu0 0.0
    %410 = vmatprep.subr.mxu0 0.0
    %411 = vmatpush1.xpose.msra.mxu0 0.0
    %412 = vmatprep.subr.mxu0 0.0
    %413 = vmatpush1.xpose.msra.mxu0 0.0
    %414 = vmatprep.subr.mxu0 0.0
    %415 = vmatpush1.xpose.msra.mxu0 0.0
    %416 = vmatprep.subr.mxu0 0.0
    %417 = vmatpush1.xpose.msra.mxu0 0.0
    %418 = vmatprep.subr.mxu0 0.0
    %419 = vmatpush1.xpose.msra.mxu0 0.0
    %420 = vmatprep.subr.mxu0 0.0
    %421 = vmatpush1.xpose.msra.mxu0 0.0
    %422 = vmatprep.subr.mxu0 0.0
    %423 = vmatpush1.xpose.msra.mxu0 0.0
    %424 = vmatprep.subr.mxu0 0.0
    %425 = vmatpush1.xpose.msra.mxu0 0.0
    %426 = vmatprep.subr.mxu0 0.0
    %427 = vmatpush1.xpose.msra.mxu0 0.0
    %428 = vmatprep.mubr.f32.mxu0 0.0
    %429 = vmatmul.mubr.f32.gmra.mrb[0].mxu0 %v356
    %v430 = vpop.f32.mrb[0].mxu0
    %v431 = vadd.f32 0.0, %v430
    %v432 = vpop.f32.mrb[0].mxu0
    %433 = vmatprep.mubr.f32.mxu0 0.0
    %434 = vmatmul.mubr.f32.gmra.mrb[0].mxu0 %v358
    %v435 = vpop.f32.mrb[0].mxu0
    %v436 = vadd.f32 0.0, %v435
    %v437 = vpop.f32.mrb[0].mxu0
    %438 = vdwg.mxu0
    %439 = vrot.lane.b32.xlu0 %v174, 96
    %v440 = vpop.permute.xlu0 %439
    %441 = vrot.lane.b32.xlu0 %v176, 96
    %v442 = vpop.permute.xlu0 %441
    %v443 = vsel %vm181, %v174, 0
    %v445 = vsel %vm181, %v176, 0
    %v447 = vsel %vm181, %v440, 0
    %v449 = vsel %vm181, %v442, 0
    %451 = vmatprep.subr.mxu0 0.0
    %452 = vmatpush1.xpose.msra.mxu0 %v447
    %453 = vmatprep.subr.mxu0 0.0
    %454 = vmatpush1.xpose.msra.mxu0 %v449
    %455 = vmatprep.subr.mxu0 0.0
    %456 = vmatpush1.xpose.msra.mxu0 0.0
    %457 = vmatprep.subr.mxu0 0.0
    %458 = vmatpush1.xpose.msra.mxu0 0.0
    %459 = vmatprep.subr.mxu0 0.0
    %460 = vmatpush1.xpose.msra.mxu0 0.0
    %461 = vmatprep.subr.mxu0 0.0
    %462 = vmatpush1.xpose.msra.mxu0 0.0
    %463 = vmatprep.subr.mxu0 0.0
    %464 = vmatpush1.xpose.msra.mxu0 0.0
    %465 = vmatprep.subr.mxu0 0.0
    %466 = vmatpush1.xpose.msra.mxu0 0.0
    %467 = vmatprep.subr.mxu0 0.0
    %468 = vmatpush1.xpose.msra.mxu0 0.0
    %469 = vmatprep.subr.mxu0 0.0
    %470 = vmatpush1.xpose.msra.mxu0 0.0
    %471 = vmatprep.subr.mxu0 0.0
    %472 = vmatpush1.xpose.msra.mxu0 0.0
    %473 = vmatprep.subr.mxu0 0.0
    %474 = vmatpush1.xpose.msra.mxu0 0.0
    %475 = vmatprep.subr.mxu0 0.0
    %476 = vmatpush1.xpose.msra.mxu0 0.0
    %477 = vmatprep.subr.mxu0 0.0
    %478 = vmatpush1.xpose.msra.mxu0 0.0
    %479 = vmatprep.subr.mxu0 0.0
    %480 = vmatpush1.xpose.msra.mxu0 0.0
    %481 = vmatprep.subr.mxu0 0.0
    %482 = vmatpush1.xpose.msra.mxu0 0.0
    %483 = vmatprep.subr.mxu0 0.0
    %484 = vmatpush1.xpose.msra.mxu0 0.0
    %485 = vmatprep.subr.mxu0 0.0
    %486 = vmatpush1.xpose.msra.mxu0 0.0
    %487 = vmatprep.subr.mxu0 0.0
    %488 = vmatpush1.xpose.msra.mxu0 0.0
    %489 = vmatprep.subr.mxu0 0.0
    %490 = vmatpush1.xpose.msra.mxu0 0.0
    %491 = vmatprep.subr.mxu0 0.0
    %492 = vmatpush1.xpose.msra.mxu0 0.0
    %493 = vmatprep.subr.mxu0 0.0
    %494 = vmatpush1.xpose.msra.mxu0 0.0
    %495 = vmatprep.subr.mxu0 0.0
    %496 = vmatpush1.xpose.msra.mxu0 0.0
    %497 = vmatprep.subr.mxu0 0.0
    %498 = vmatpush1.xpose.msra.mxu0 0.0
    %499 = vmatprep.subr.mxu0 0.0
    %500 = vmatpush1.xpose.msra.mxu0 0.0
    %501 = vmatprep.subr.mxu0 0.0
    %502 = vmatpush1.xpose.msra.mxu0 0.0
    %503 = vmatprep.subr.mxu0 0.0
    %504 = vmatpush1.xpose.msra.mxu0 0.0
    %505 = vmatprep.subr.mxu0 0.0
    %506 = vmatpush1.xpose.msra.mxu0 0.0
    %507 = vmatprep.subr.mxu0 0.0
    %508 = vmatpush1.xpose.msra.mxu0 0.0
    %509 = vmatprep.subr.mxu0 0.0
    %510 = vmatpush1.xpose.msra.mxu0 0.0
    %511 = vmatprep.subr.mxu0 0.0
    %512 = vmatpush1.xpose.msra.mxu0 0.0
    %513 = vmatprep.subr.mxu0 0.0
    %514 = vmatpush1.xpose.msra.mxu0 0.0
    %515 = vmatprep.mubr.f32.mxu0 0.0
    %516 = vmatmul.mubr.f32.gmra.mrb[0].mxu0 %v443
    %v517 = vpop.f32.mrb[0].mxu0
    %v518 = vadd.f32 0.0, %v517
    %v519 = vpop.f32.mrb[0].mxu0
    %520 = vmatprep.mubr.f32.mxu0 0.0
    %521 = vmatmul.mubr.f32.gmra.mrb[0].mxu0 %v445
    %v522 = vpop.f32.mrb[0].mxu0
    %v523 = vadd.f32 0.0, %v522
    %v524 = vpop.f32.mrb[0].mxu0
    %525 = vdwg.mxu0
    %vm526 = vcmask 130048
    %527 = vst.msk [vmem:[%s15] sm:$0xff] %vm526, %v257
    %528 = vst.msk [vmem:[%s15 + $0x8] sm:$0xff] %vm526, %v262
    %529 = vst.msk [vmem:[%s15 + $0x10] sm:$0xff] %vm526, %v344
    %530 = vst.msk [vmem:[%s15 + $0x18] sm:$0xff] %vm526, %v349
    %531 = vst.msk [vmem:[%s15 + $0x20] sm:$0xff] %vm526, %v431
    %532 = vst.msk [vmem:[%s15 + $0x28] sm:$0xff] %vm526, %v436
    %533 = vst.msk [vmem:[%s15 + $0x30] sm:$0xff] %vm526, %v518
    %534 = vst.msk [vmem:[%s15 + $0x38] sm:$0xff] %vm526, %v523
    %v535 = vld [vmem:[%s1] sm:$0xff]
    %v536 = vld [vmem:[%s1 + $0x8] sm:$0xff]
    %vm537 = vcmp.gt.f32.partialorder %v535, 0.0
    %vm538 = vcmp.gt.f32.partialorder %v536, 0.0
    %v539 = vsel %vm537, 1, 0
    %v540 = vsel %vm538, 1, 0
    %vm541 = vcmp.eq.s32.totalorder %v539, 1
    %vm542 = vcmp.eq.s32.totalorder %v540, 1
    %v543 = vsel %vm541, %v257, -4.2949673e+09
    %v544 = vsel %vm542, %v262, -4.2949673e+09
    %v545 = vsel %vm541, %v344, -4.2949673e+09
    %v546 = vsel %vm542, %v349, -4.2949673e+09
    %v547 = vsel %vm541, %v431, -4.2949673e+09
    %v548 = vsel %vm542, %v436, -4.2949673e+09
    %v549 = vsel %vm541, %v518, -4.2949673e+09
    %v550 = vsel %vm542, %v523, -4.2949673e+09
    %v551 = vsel %vm526, %v543, -inf
    %552 = vmax.xlane.f32.xlu0 %v551
    %v553 = vpop.xlane.xlu0 %552
    %v554 = vsel %vm526, %v544, -inf
    %555 = vmax.xlane.f32.xlu0 %v554
    %v556 = vpop.xlane.xlu0 %555
    %v557 = vsel %vm526, %v545, -inf
    %558 = vmax.xlane.f32.xlu0 %v557
    %v559 = vpop.xlane.xlu0 %558
    %v560 = vsel %vm526, %v546, -inf
    %561 = vmax.xlane.f32.xlu0 %v560
    %v562 = vpop.xlane.xlu0 %561
    %v563 = vsel %vm526, %v547, -inf
    %564 = vmax.xlane.f32.xlu0 %v563
    %v565 = vpop.xlane.xlu0 %564
    %v566 = vsel %vm526, %v548, -inf
    %567 = vmax.xlane.f32.xlu0 %v566
    %v568 = vpop.xlane.xlu0 %567
    %v569 = vsel %vm526, %v549, -inf
    %570 = vmax.xlane.f32.xlu0 %v569
    %v571 = vpop.xlane.xlu0 %570
    %v572 = vsel %vm526, %v550, -inf
    %573 = vmax.xlane.f32.xlu0 %v572
    %v574 = vpop.xlane.xlu0 %573
    %v575 = vsub.f32 %v543, %v553
    %v576 = vsub.f32 %v544, %v556
    %v577 = vsub.f32 %v545, %v559
    %v578 = vsub.f32 %v546, %v562
    %v579 = vsub.f32 %v547, %v565
    %v580 = vsub.f32 %v548, %v568
    %v581 = vsub.f32 %v549, %v571
    %v582 = vsub.f32 %v550, %v574
    %v583 = vmul.f32 %v575, 1.442695
    %v584 = vpow.pop %v583
    %v585 = vmul.f32 %v576, 1.442695
    %v586 = vpow.pop %v585
    %v587 = vmul.f32 %v577, 1.442695
    %v588 = vpow.pop %v587
    %v589 = vmul.f32 %v578, 1.442695
    %v590 = vpow.pop %v589
    %v591 = vmul.f32 %v579, 1.442695
    %v592 = vpow.pop %v591
    %v593 = vmul.f32 %v580, 1.442695
    %v594 = vpow.pop %v593
    %v595 = vmul.f32 %v581, 1.442695
    %v596 = vpow.pop %v595
    %v597 = vmul.f32 %v582, 1.442695
    %v598 = vpow.pop %v597
    %v599 = vsel %vm526, %v584, 0.0
    %600 = vadd.xlane.f32.xlu0 %v599
    %v601 = vpop.xlane.xlu0 %600
    %v602 = vsel %vm526, %v586, 0.0
    %603 = vadd.xlane.f32.xlu0 %v602
    %v604 = vpop.xlane.xlu0 %603
    %v605 = vsel %vm526, %v588, 0.0
    %606 = vadd.xlane.f32.xlu0 %v605
    %v607 = vpop.xlane.xlu0 %606
    %v608 = vsel %vm526, %v590, 0.0
    %609 = vadd.xlane.f32.xlu0 %v608
    %v610 = vpop.xlane.xlu0 %609
    %v611 = vsel %vm526, %v592, 0.0
    %612 = vadd.xlane.f32.xlu0 %v611
    %v613 = vpop.xlane.xlu0 %612
    %v614 = vsel %vm526, %v594, 0.0
    %615 = vadd.xlane.f32.xlu0 %v614
    %v616 = vpop.xlane.xlu0 %615
    %v617 = vsel %vm526, %v596, 0.0
    %618 = vadd.xlane.f32.xlu0 %v617
    %v619 = vpop.xlane.xlu0 %618
    %v620 = vsel %vm526, %v598, 0.0
    %621 = vadd.xlane.f32.xlu0 %v620
    %v622 = vpop.xlane.xlu0 %621
    %v623 = vrcp.pop %v601
    %v624 = vmul.f32 %v584, %v623
    %v625 = vrcp.pop %v604
    %v626 = vmul.f32 %v586, %v625
    %v627 = vrcp.pop %v607
    %v628 = vmul.f32 %v588, %v627
    %v629 = vrcp.pop %v610
    %v630 = vmul.f32 %v590, %v629
    %v631 = vrcp.pop %v613
    %v632 = vmul.f32 %v592, %v631
    %v633 = vrcp.pop %v616
    %v634 = vmul.f32 %v594, %v633
    %v635 = vrcp.pop %v619
    %v636 = vmul.f32 %v596, %v635
    %v637 = vrcp.pop %v622
    %v638 = vmul.f32 %v598, %v637
    %639 = vrot.lane.b32.xlu0 %v145, 64
    %v640 = vpop.permute.xlu0 %639
    %641 = vrot.lane.b32.xlu0 %v150, 64
    %v642 = vpop.permute.xlu0 %641
    %v646 = vsel %vm526, %v624, 0
    %v649 = vsel %vm526, %v626, 0
    %651 = vmatprep.subr.mxu0 0.0
    %652 = vmatpush1.msra.mxu0 %v640
    %653 = vmatprep.subr.mxu0 0.0
    %654 = vmatpush1.msra.mxu0 %v642
    %655 = vmatprep.subr.mxu0 0.0
    %656 = vmatpush1.msra.mxu0 0.0
    %657 = vmatprep.subr.mxu0 0.0
    %658 = vmatpush1.msra.mxu0 0.0
    %659 = vmatprep.subr.mxu0 0.0
    %660 = vmatpush1.msra.mxu0 0.0
    %661 = vmatprep.subr.mxu0 0.0
    %662 = vmatpush1.msra.mxu0 0.0
    %663 = vmatprep.subr.mxu0 0.0
    %664 = vmatpush1.msra.mxu0 0.0
    %665 = vmatprep.subr.mxu0 0.0
    %666 = vmatpush1.msra.mxu0 0.0
    %667 = vmatprep.subr.mxu0 0.0
    %668 = vmatpush1.msra.mxu0 0.0
    %669 = vmatprep.subr.mxu0 0.0
    %670 = vmatpush1.msra.mxu0 0.0
    %671 = vmatprep.subr.mxu0 0.0
    %672 = vmatpush1.msra.mxu0 0.0
    %673 = vmatprep.subr.mxu0 0.0
    %674 = vmatpush1.msra.mxu0 0.0
    %675 = vmatprep.subr.mxu0 0.0
    %676 = vmatpush1.msra.mxu0 0.0
    %677 = vmatprep.subr.mxu0 0.0
    %678 = vmatpush1.msra.mxu0 0.0
    %679 = vmatprep.subr.mxu0 0.0
    %680 = vmatpush1.msra.mxu0 0.0
    %681 = vmatprep.subr.mxu0 0.0
    %682 = vmatpush1.msra.mxu0 0.0
    %683 = vmatprep.subr.mxu0 0.0
    %684 = vmatpush1.msra.mxu0 0.0
    %685 = vmatprep.subr.mxu0 0.0
    %686 = vmatpush1.msra.mxu0 0.0
    %687 = vmatprep.subr.mxu0 0.0
    %688 = vmatpush1.msra.mxu0 0.0
    %689 = vmatprep.subr.mxu0 0.0
    %690 = vmatpush1.msra.mxu0 0.0
    %691 = vmatprep.subr.mxu0 0.0
    %692 = vmatpush1.msra.mxu0 0.0
    %693 = vmatprep.subr.mxu0 0.0
    %694 = vmatpush1.msra.mxu0 0.0
    %695 = vmatprep.subr.mxu0 0.0
    %696 = vmatpush1.msra.mxu0 0.0
    %697 = vmatprep.subr.mxu0 0.0
    %698 = vmatpush1.msra.mxu0 0.0
    %699 = vmatprep.subr.mxu0 0.0
    %700 = vmatpush1.msra.mxu0 0.0
    %701 = vmatprep.subr.mxu0 0.0
    %702 = vmatpush1.msra.mxu0 0.0
    %703 = vmatprep.subr.mxu0 0.0
    %704 = vmatpush1.msra.mxu0 0.0
    %705 = vmatprep.subr.mxu0 0.0
    %706 = vmatpush1.msra.mxu0 0.0
    %707 = vmatprep.subr.mxu0 0.0
    %708 = vmatpush1.msra.mxu0 0.0
    %709 = vmatprep.subr.mxu0 0.0
    %710 = vmatpush1.msra.mxu0 0.0
    %711 = vmatprep.subr.mxu0 0.0
    %712 = vmatpush1.msra.mxu0 0.0
    %713 = vmatprep.subr.mxu0 0.0
    %714 = vmatpush1.msra.mxu0 0.0
    %715 = vmatprep.mubr.f32.mxu0 0.0
    %716 = vmatmul.mubr.f32.gmra.mrb[0].mxu0 %v646
    %v717 = vpop.f32.mrb[0].mxu0
    %v718 = vadd.f32 0.0, %v717
    %v719 = vpop.f32.mrb[0].mxu0
    %720 = vmatprep.mubr.f32.mxu0 0.0
    %721 = vmatmul.mubr.f32.gmra.mrb[0].mxu0 %v649
    %v722 = vpop.f32.mrb[0].mxu0
    %v723 = vadd.f32 0.0, %v722
    %v724 = vpop.f32.mrb[0].mxu0
    %725 = vdwg.mxu0
    %726 = vrot.lane.b32.xlu0 %v166, 64
    %v727 = vpop.permute.xlu0 %726
    %728 = vrot.lane.b32.xlu0 %v168, 64
    %v729 = vpop.permute.xlu0 %728
    %v733 = vsel %vm526, %v628, 0
    %v736 = vsel %vm526, %v630, 0
    %738 = vmatprep.subr.mxu0 0.0
    %739 = vmatpush1.msra.mxu0 %v727
    %740 = vmatprep.subr.mxu0 0.0
    %741 = vmatpush1.msra.mxu0 %v729
    %742 = vmatprep.subr.mxu0 0.0
    %743 = vmatpush1.msra.mxu0 0.0
    %744 = vmatprep.subr.mxu0 0.0
    %745 = vmatpush1.msra.mxu0 0.0
    %746 = vmatprep.subr.mxu0 0.0
    %747 = vmatpush1.msra.mxu0 0.0
    %748 = vmatprep.subr.mxu0 0.0
    %749 = vmatpush1.msra.mxu0 0.0
    %750 = vmatprep.subr.mxu0 0.0
    %751 = vmatpush1.msra.mxu0 0.0
    %752 = vmatprep.subr.mxu0 0.0
    %753 = vmatpush1.msra.mxu0 0.0
    %754 = vmatprep.subr.mxu0 0.0
    %755 = vmatpush1.msra.mxu0 0.0
    %756 = vmatprep.subr.mxu0 0.0
    %757 = vmatpush1.msra.mxu0 0.0
    %758 = vmatprep.subr.mxu0 0.0
    %759 = vmatpush1.msra.mxu0 0.0
    %760 = vmatprep.subr.mxu0 0.0
    %761 = vmatpush1.msra.mxu0 0.0
    %762 = vmatprep.subr.mxu0 0.0
    %763 = vmatpush1.msra.mxu0 0.0
    %764 = vmatprep.subr.mxu0 0.0
    %765 = vmatpush1.msra.mxu0 0.0
    %766 = vmatprep.subr.mxu0 0.0
    %767 = vmatpush1.msra.mxu0 0.0
    %768 = vmatprep.subr.mxu0 0.0
    %769 = vmatpush1.msra.mxu0 0.0
    %770 = vmatprep.subr.mxu0 0.0
    %771 = vmatpush1.msra.mxu0 0.0
    %772 = vmatprep.subr.mxu0 0.0
    %773 = vmatpush1.msra.mxu0 0.0
    %774 = vmatprep.subr.mxu0 0.0
    %775 = vmatpush1.msra.mxu0 0.0
    %776 = vmatprep.subr.mxu0 0.0
    %777 = vmatpush1.msra.mxu0 0.0
    %778 = vmatprep.subr.mxu0 0.0
    %779 = vmatpush1.msra.mxu0 0.0
    %780 = vmatprep.subr.mxu0 0.0
    %781 = vmatpush1.msra.mxu0 0.0
    %782 = vmatprep.subr.mxu0 0.0
    %783 = vmatpush1.msra.mxu0 0.0
    %784 = vmatprep.subr.mxu0 0.0
    %785 = vmatpush1.msra.mxu0 0.0
    %786 = vmatprep.subr.mxu0 0.0
    %787 = vmatpush1.msra.mxu0 0.0
    %788 = vmatprep.subr.mxu0 0.0
    %789 = vmatpush1.msra.mxu0 0.0
    %790 = vmatprep.subr.mxu0 0.0
    %791 = vmatpush1.msra.mxu0 0.0
    %792 = vmatprep.subr.mxu0 0.0
    %793 = vmatpush1.msra.mxu0 0.0
    %794 = vmatprep.subr.mxu0 0.0
    %795 = vmatpush1.msra.mxu0 0.0
    %796 = vmatprep.subr.mxu0 0.0
    %797 = vmatpush1.msra.mxu0 0.0
    %798 = vmatprep.subr.mxu0 0.0
    %799 = vmatpush1.msra.mxu0 0.0
    %800 = vmatprep.subr.mxu0 0.0
    %801 = vmatpush1.msra.mxu0 0.0
    %802 = vmatprep.mubr.f32.mxu0 0.0
    %803 = vmatmul.mubr.f32.gmra.mrb[0].mxu0 %v733
    %v804 = vpop.f32.mrb[0].mxu0
    %v805 = vadd.f32 0.0, %v804
    %v806 = vpop.f32.mrb[0].mxu0
    %807 = vmatprep.mubr.f32.mxu0 0.0
    %808 = vmatmul.mubr.f32.gmra.mrb[0].mxu0 %v736
    %v809 = vpop.f32.mrb[0].mxu0
    %v810 = vadd.f32 0.0, %v809
    %v811 = vpop.f32.mrb[0].mxu0
    %812 = vdwg.mxu0
    %813 = vrot.lane.b32.xlu0 %v170, 64
    %v814 = vpop.permute.xlu0 %813
    %815 = vrot.lane.b32.xlu0 %v172, 64
    %v816 = vpop.permute.xlu0 %815
    %v820 = vsel %vm526, %v632, 0
    %v823 = vsel %vm526, %v634, 0
    %825 = vmatprep.subr.mxu0 0.0
    %826 = vmatpush1.msra.mxu0 %v814
    %827 = vmatprep.subr.mxu0 0.0
    %828 = vmatpush1.msra.mxu0 %v816
    %829 = vmatprep.subr.mxu0 0.0
    %830 = vmatpush1.msra.mxu0 0.0
    %831 = vmatprep.subr.mxu0 0.0
    %832 = vmatpush1.msra.mxu0 0.0
    %833 = vmatprep.subr.mxu0 0.0
    %834 = vmatpush1.msra.mxu0 0.0
    %835 = vmatprep.subr.mxu0 0.0
    %836 = vmatpush1.msra.mxu0 0.0
    %837 = vmatprep.subr.mxu0 0.0
    %838 = vmatpush1.msra.mxu0 0.0
    %839 = vmatprep.subr.mxu0 0.0
    %840 = vmatpush1.msra.mxu0 0.0
    %841 = vmatprep.subr.mxu0 0.0
    %842 = vmatpush1.msra.mxu0 0.0
    %843 = vmatprep.subr.mxu0 0.0
    %844 = vmatpush1.msra.mxu0 0.0
    %845 = vmatprep.subr.mxu0 0.0
    %846 = vmatpush1.msra.mxu0 0.0
    %847 = vmatprep.subr.mxu0 0.0
    %848 = vmatpush1.msra.mxu0 0.0
    %849 = vmatprep.subr.mxu0 0.0
    %850 = vmatpush1.msra.mxu0 0.0
    %851 = vmatprep.subr.mxu0 0.0
    %852 = vmatpush1.msra.mxu0 0.0
    %853 = vmatprep.subr.mxu0 0.0
    %854 = vmatpush1.msra.mxu0 0.0
    %855 = vmatprep.subr.mxu0 0.0
    %856 = vmatpush1.msra.mxu0 0.0
    %857 = vmatprep.subr.mxu0 0.0
    %858 = vmatpush1.msra.mxu0 0.0
    %859 = vmatprep.subr.mxu0 0.0
    %860 = vmatpush1.msra.mxu0 0.0
    %861 = vmatprep.subr.mxu0 0.0
    %862 = vmatpush1.msra.mxu0 0.0
    %863 = vmatprep.subr.mxu0 0.0
    %864 = vmatpush1.msra.mxu0 0.0
    %865 = vmatprep.subr.mxu0 0.0
    %866 = vmatpush1.msra.mxu0 0.0
    %867 = vmatprep.subr.mxu0 0.0
    %868 = vmatpush1.msra.mxu0 0.0
    %869 = vmatprep.subr.mxu0 0.0
    %870 = vmatpush1.msra.mxu0 0.0
    %871 = vmatprep.subr.mxu0 0.0
    %872 = vmatpush1.msra.mxu0 0.0
    %873 = vmatprep.subr.mxu0 0.0
    %874 = vmatpush1.msra.mxu0 0.0
    %875 = vmatprep.subr.mxu0 0.0
    %876 = vmatpush1.msra.mxu0 0.0
    %877 = vmatprep.subr.mxu0 0.0
    %878 = vmatpush1.msra.mxu0 0.0
    %879 = vmatprep.subr.mxu0 0.0
    %880 = vmatpush1.msra.mxu0 0.0
    %881 = vmatprep.subr.mxu0 0.0
    %882 = vmatpush1.msra.mxu0 0.0
    %883 = vmatprep.subr.mxu0 0.0
    %884 = vmatpush1.msra.mxu0 0.0
    %885 = vmatprep.subr.mxu0 0.0
    %886 = vmatpush1.msra.mxu0 0.0
    %887 = vmatprep.subr.mxu0 0.0
    %888 = vmatpush1.msra.mxu0 0.0
    %889 = vmatprep.mubr.f32.mxu0 0.0
    %890 = vmatmul.mubr.f32.gmra.mrb[0].mxu0 %v820
    %v891 = vpop.f32.mrb[0].mxu0
    %v892 = vadd.f32 0.0, %v891
    %v893 = vpop.f32.mrb[0].mxu0
    %894 = vmatprep.mubr.f32.mxu0 0.0
    %895 = vmatmul.mubr.f32.gmra.mrb[0].mxu0 %v823
    %v896 = vpop.f32.mrb[0].mxu0
    %v897 = vadd.f32 0.0, %v896
    %v898 = vpop.f32.mrb[0].mxu0
    %899 = vdwg.mxu0
    %900 = vrot.lane.b32.xlu0 %v174, 64
    %v901 = vpop.permute.xlu0 %900
    %902 = vrot.lane.b32.xlu0 %v176, 64
    %v903 = vpop.permute.xlu0 %902
    %v907 = vsel %vm526, %v636, 0
    %v910 = vsel %vm526, %v638, 0
    %912 = vmatprep.subr.mxu0 0.0
    %913 = vmatpush1.msra.mxu0 %v901
    %914 = vmatprep.subr.mxu0 0.0
    %915 = vmatpush1.msra.mxu0 %v903
    %916 = vmatprep.subr.mxu0 0.0
    %917 = vmatpush1.msra.mxu0 0.0
    %918 = vmatprep.subr.mxu0 0.0
    %919 = vmatpush1.msra.mxu0 0.0
    %920 = vmatprep.subr.mxu0 0.0
    %921 = vmatpush1.msra.mxu0 0.0
    %922 = vmatprep.subr.mxu0 0.0
    %923 = vmatpush1.msra.mxu0 0.0
    %924 = vmatprep.subr.mxu0 0.0
    %925 = vmatpush1.msra.mxu0 0.0
    %926 = vmatprep.subr.mxu0 0.0
    %927 = vmatpush1.msra.mxu0 0.0
    %928 = vmatprep.subr.mxu0 0.0
    %929 = vmatpush1.msra.mxu0 0.0
    %930 = vmatprep.subr.mxu0 0.0
    %931 = vmatpush1.msra.mxu0 0.0
    %932 = vmatprep.subr.mxu0 0.0
    %933 = vmatpush1.msra.mxu0 0.0
    %934 = vmatprep.subr.mxu0 0.0
    %935 = vmatpush1.msra.mxu0 0.0
    %936 = vmatprep.subr.mxu0 0.0
    %937 = vmatpush1.msra.mxu0 0.0
    %938 = vmatprep.subr.mxu0 0.0
    %939 = vmatpush1.msra.mxu0 0.0
    %940 = vmatprep.subr.mxu0 0.0
    %941 = vmatpush1.msra.mxu0 0.0
    %942 = vmatprep.subr.mxu0 0.0
    %943 = vmatpush1.msra.mxu0 0.0
    %944 = vmatprep.subr.mxu0 0.0
    %945 = vmatpush1.msra.mxu0 0.0
    %946 = vmatprep.subr.mxu0 0.0
    %947 = vmatpush1.msra.mxu0 0.0
    %948 = vmatprep.subr.mxu0 0.0
    %949 = vmatpush1.msra.mxu0 0.0
    %950 = vmatprep.subr.mxu0 0.0
    %951 = vmatpush1.msra.mxu0 0.0
    %952 = vmatprep.subr.mxu0 0.0
    %953 = vmatpush1.msra.mxu0 0.0
    %954 = vmatprep.subr.mxu0 0.0
    %955 = vmatpush1.msra.mxu0 0.0
    %956 = vmatprep.subr.mxu0 0.0
    %957 = vmatpush1.msra.mxu0 0.0
    %958 = vmatprep.subr.mxu0 0.0
    %959 = vmatpush1.msra.mxu0 0.0
    %960 = vmatprep.subr.mxu0 0.0
    %961 = vmatpush1.msra.mxu0 0.0
    %962 = vmatprep.subr.mxu0 0.0
    %963 = vmatpush1.msra.mxu0 0.0
    %964 = vmatprep.subr.mxu0 0.0
    %965 = vmatpush1.msra.mxu0 0.0
    %966 = vmatprep.subr.mxu0 0.0
    %967 = vmatpush1.msra.mxu0 0.0
    %968 = vmatprep.subr.mxu0 0.0
    %969 = vmatpush1.msra.mxu0 0.0
    %970 = vmatprep.subr.mxu0 0.0
    %971 = vmatpush1.msra.mxu0 0.0
    %972 = vmatprep.subr.mxu0 0.0
    %973 = vmatpush1.msra.mxu0 0.0
    %974 = vmatprep.subr.mxu0 0.0
    %975 = vmatpush1.msra.mxu0 0.0
    %976 = vmatprep.mubr.f32.mxu0 0.0
    %977 = vmatmul.mubr.f32.gmra.mrb[0].mxu0 %v907
    %v978 = vpop.f32.mrb[0].mxu0
    %v979 = vadd.f32 0.0, %v978
    %v980 = vpop.f32.mrb[0].mxu0
    %981 = vmatprep.mubr.f32.mxu0 0.0
    %982 = vmatmul.mubr.f32.gmra.mrb[0].mxu0 %v910
    %v983 = vpop.f32.mrb[0].mxu0
    %v984 = vadd.f32 0.0, %v983
    %v985 = vpop.f32.mrb[0].mxu0
    %986 = vdwg.mxu0
    %989 = vrot.lane.b32.xlu0 %v805, 8
    %v990 = vpop.permute.xlu0 %989
    %991 = vrot.lane.b32.xlu0 %v810, 8
    %v992 = vpop.permute.xlu0 %991
    %997 = vrot.lane.b32.xlu0 %v892, 16
    %v998 = vpop.permute.xlu0 %997
    %999 = vrot.lane.b32.xlu0 %v897, 16
    %v1000 = vpop.permute.xlu0 %999
    %1005 = vrot.lane.b32.xlu0 %v979, 24
    %v1006 = vpop.permute.xlu0 %1005
    %1007 = vrot.lane.b32.xlu0 %v984, 24
    %v1008 = vpop.permute.xlu0 %1007
    %v1011 = vsel %vm181, %v718, %v990
    %v1012 = vsel %vm181, %v723, %v992
    %v1013 = vsel %vm526, %v1011, %v998
    %v1014 = vsel %vm526, %v1012, %v1000
    %vm1015 = vcmask 195584
    %v1016 = vsel %vm1015, %v1013, %v1006
    %v1017 = vsel %vm1015, %v1014, %v1008
    %1020 = vrot.lane.b32.xlu0 %v155, 120
    %v1021 = vpop.permute.xlu0 %1020
    %1022 = vrot.lane.b32.xlu0 %v160, 120
    %v1023 = vpop.permute.xlu0 %1022
    %1024 = vrot.lane.b32.xlu0 %v155, 112
    %v1025 = vpop.permute.xlu0 %1024
    %1026 = vrot.lane.b32.xlu0 %v160, 112
    %v1027 = vpop.permute.xlu0 %1026
    %1028 = vrot.lane.b32.xlu0 %v155, 104
    %v1029 = vpop.permute.xlu0 %1028
    %1030 = vrot.lane.b32.xlu0 %v160, 104
    %v1031 = vpop.permute.xlu0 %1030
    %1032 = vrot.lane.b32.xlu0 %v155, 96
    %v1033 = vpop.permute.xlu0 %1032
    %1034 = vrot.lane.b32.xlu0 %v160, 96
    %v1035 = vpop.permute.xlu0 %1034
    %v1036 = vsel %vm181, %v155, 0
    %v1038 = vsel %vm181, %v160, 0
    %v1040 = vsel %vm181, %v1033, 0
    %v1042 = vsel %vm181, %v1035, 0
    %1044 = vmatprep.subr.mxu0 0.0
    %1045 = vmatpush1.xpose.msra.mxu0 %v1040
    %1046 = vmatprep.subr.mxu0 0.0
    %1047 = vmatpush1.xpose.msra.mxu0 %v1042
    %1048 = vmatprep.subr.mxu0 0.0
    %1049 = vmatpush1.xpose.msra.mxu0 0.0
    %1050 = vmatprep.subr.mxu0 0.0
    %1051 = vmatpush1.xpose.msra.mxu0 0.0
    %1052 = vmatprep.subr.mxu0 0.0
    %1053 = vmatpush1.xpose.msra.mxu0 0.0
    %1054 = vmatprep.subr.mxu0 0.0
    %1055 = vmatpush1.xpose.msra.mxu0 0.0
    %1056 = vmatprep.subr.mxu0 0.0
    %1057 = vmatpush1.xpose.msra.mxu0 0.0
    %1058 = vmatprep.subr.mxu0 0.0
    %1059 = vmatpush1.xpose.msra.mxu0 0.0
    %1060 = vmatprep.subr.mxu0 0.0
    %1061 = vmatpush1.xpose.msra.mxu0 0.0
    %1062 = vmatprep.subr.mxu0 0.0
    %1063 = vmatpush1.xpose.msra.mxu0 0.0
    %1064 = vmatprep.subr.mxu0 0.0
    %1065 = vmatpush1.xpose.msra.mxu0 0.0
    %1066 = vmatprep.subr.mxu0 0.0
    %1067 = vmatpush1.xpose.msra.mxu0 0.0
    %1068 = vmatprep.subr.mxu0 0.0
    %1069 = vmatpush1.xpose.msra.mxu0 0.0
    %1070 = vmatprep.subr.mxu0 0.0
    %1071 = vmatpush1.xpose.msra.mxu0 0.0
    %1072 = vmatprep.subr.mxu0 0.0
    %1073 = vmatpush1.xpose.msra.mxu0 0.0
    %1074 = vmatprep.subr.mxu0 0.0
    %1075 = vmatpush1.xpose.msra.mxu0 0.0
    %1076 = vmatprep.subr.mxu0 0.0
    %1077 = vmatpush1.xpose.msra.mxu0 0.0
    %1078 = vmatprep.subr.mxu0 0.0
    %1079 = vmatpush1.xpose.msra.mxu0 0.0
    %1080 = vmatprep.subr.mxu0 0.0
    %1081 = vmatpush1.xpose.msra.mxu0 0.0
    %1082 = vmatprep.subr.mxu0 0.0
    %1083 = vmatpush1.xpose.msra.mxu0 0.0
    %1084 = vmatprep.subr.mxu0 0.0
    %1085 = vmatpush1.xpose.msra.mxu0 0.0
    %1086 = vmatprep.subr.mxu0 0.0
    %1087 = vmatpush1.xpose.msra.mxu0 0.0
    %1088 = vmatprep.subr.mxu0 0.0
    %1089 = vmatpush1.xpose.msra.mxu0 0.0
    %1090 = vmatprep.subr.mxu0 0.0
    %1091 = vmatpush1.xpose.msra.mxu0 0.0
    %1092 = vmatprep.subr.mxu0 0.0
    %1093 = vmatpush1.xpose.msra.mxu0 0.0
    %1094 = vmatprep.subr.mxu0 0.0
    %1095 = vmatpush1.xpose.msra.mxu0 0.0
    %1096 = vmatprep.subr.mxu0 0.0
    %1097 = vmatpush1.xpose.msra.mxu0 0.0
    %1098 = vmatprep.subr.mxu0 0.0
    %1099 = vmatpush1.xpose.msra.mxu0 0.0
    %1100 = vmatprep.subr.mxu0 0.0
    %1101 = vmatpush1.xpose.msra.mxu0 0.0
    %1102 = vmatprep.subr.mxu0 0.0
    %1103 = vmatpush1.xpose.msra.mxu0 0.0
    %1104 = vmatprep.subr.mxu0 0.0
    %1105 = vmatpush1.xpose.msra.mxu0 0.0
    %1106 = vmatprep.subr.mxu0 0.0
    %1107 = vmatpush1.xpose.msra.mxu0 0.0
    %1108 = vmatprep.mubr.f32.mxu0 0.0
    %1109 = vmatmul.mubr.f32.gmra.mrb[0].mxu0 %v1036
    %v1110 = vpop.f32.mrb[0].mxu0
    %v1111 = vadd.f32 0.0, %v1110
    %v1112 = vpop.f32.mrb[0].mxu0
    %1113 = vmatprep.mubr.f32.mxu0 0.0
    %1114 = vmatmul.mubr.f32.gmra.mrb[0].mxu0 %v1038
    %v1115 = vpop.f32.mrb[0].mxu0
    %v1116 = vadd.f32 0.0, %v1115
    %v1117 = vpop.f32.mrb[0].mxu0
    %1118 = vdwg.mxu0
    %1119 = vrot.lane.b32.xlu0 %v1021, 96
    %v1120 = vpop.permute.xlu0 %1119
    %1121 = vrot.lane.b32.xlu0 %v1023, 96
    %v1122 = vpop.permute.xlu0 %1121
    %v1123 = vsel %vm181, %v1021, 0
    %v1125 = vsel %vm181, %v1023, 0
    %v1127 = vsel %vm181, %v1120, 0
    %v1129 = vsel %vm181, %v1122, 0
    %1131 = vmatprep.subr.mxu0 0.0
    %1132 = vmatpush1.xpose.msra.mxu0 %v1127
    %1133 = vmatprep.subr.mxu0 0.0
    %1134 = vmatpush1.xpose.msra.mxu0 %v1129
    %1135 = vmatprep.subr.mxu0 0.0
    %1136 = vmatpush1.xpose.msra.mxu0 0.0
    %1137 = vmatprep.subr.mxu0 0.0
    %1138 = vmatpush1.xpose.msra.mxu0 0.0
    %1139 = vmatprep.subr.mxu0 0.0
    %1140 = vmatpush1.xpose.msra.mxu0 0.0
    %1141 = vmatprep.subr.mxu0 0.0
    %1142 = vmatpush1.xpose.msra.mxu0 0.0
    %1143 = vmatprep.subr.mxu0 0.0
    %1144 = vmatpush1.xpose.msra.mxu0 0.0
    %1145 = vmatprep.subr.mxu0 0.0
    %1146 = vmatpush1.xpose.msra.mxu0 0.0
    %1147 = vmatprep.subr.mxu0 0.0
    %1148 = vmatpush1.xpose.msra.mxu0 0.0
    %1149 = vmatprep.subr.mxu0 0.0
    %1150 = vmatpush1.xpose.msra.mxu0 0.0
    %1151 = vmatprep.subr.mxu0 0.0
    %1152 = vmatpush1.xpose.msra.mxu0 0.0
    %1153 = vmatprep.subr.mxu0 0.0
    %1154 = vmatpush1.xpose.msra.mxu0 0.0
    %1155 = vmatprep.subr.mxu0 0.0
    %1156 = vmatpush1.xpose.msra.mxu0 0.0
    %1157 = vmatprep.subr.mxu0 0.0
    %1158 = vmatpush1.xpose.msra.mxu0 0.0
    %1159 = vmatprep.subr.mxu0 0.0
    %1160 = vmatpush1.xpose.msra.mxu0 0.0
    %1161 = vmatprep.subr.mxu0 0.0
    %1162 = vmatpush1.xpose.msra.mxu0 0.0
    %1163 = vmatprep.subr.mxu0 0.0
    %1164 = vmatpush1.xpose.msra.mxu0 0.0
    %1165 = vmatprep.subr.mxu0 0.0
    %1166 = vmatpush1.xpose.msra.mxu0 0.0
    %1167 = vmatprep.subr.mxu0 0.0
    %1168 = vmatpush1.xpose.msra.mxu0 0.0
    %1169 = vmatprep.subr.mxu0 0.0
    %1170 = vmatpush1.xpose.msra.mxu0 0.0
    %1171 = vmatprep.subr.mxu0 0.0
    %1172 = vmatpush1.xpose.msra.mxu0 0.0
    %1173 = vmatprep.subr.mxu0 0.0
    %1174 = vmatpush1.xpose.msra.mxu0 0.0
    %1175 = vmatprep.subr.mxu0 0.0
    %1176 = vmatpush1.xpose.msra.mxu0 0.0
    %1177 = vmatprep.subr.mxu0 0.0
    %1178 = vmatpush1.xpose.msra.mxu0 0.0
    %1179 = vmatprep.subr.mxu0 0.0
    %1180 = vmatpush1.xpose.msra.mxu0 0.0
    %1181 = vmatprep.subr.mxu0 0.0
    %1182 = vmatpush1.xpose.msra.mxu0 0.0
    %1183 = vmatprep.subr.mxu0 0.0
    %1184 = vmatpush1.xpose.msra.mxu0 0.0
    %1185 = vmatprep.subr.mxu0 0.0
    %1186 = vmatpush1.xpose.msra.mxu0 0.0
    %1187 = vmatprep.subr.mxu0 0.0
    %1188 = vmatpush1.xpose.msra.mxu0 0.0
    %1189 = vmatprep.subr.mxu0 0.0
    %1190 = vmatpush1.xpose.msra.mxu0 0.0
    %1191 = vmatprep.subr.mxu0 0.0
    %1192 = vmatpush1.xpose.msra.mxu0 0.0
    %1193 = vmatprep.subr.mxu0 0.0
    %1194 = vmatpush1.xpose.msra.mxu0 0.0
    %1195 = vmatprep.mubr.f32.mxu0 0.0
    %1196 = vmatmul.mubr.f32.gmra.mrb[0].mxu0 %v1123
    %v1197 = vpop.f32.mrb[0].mxu0
    %v1198 = vadd.f32 0.0, %v1197
    %v1199 = vpop.f32.mrb[0].mxu0
    %1200 = vmatprep.mubr.f32.mxu0 0.0
    %1201 = vmatmul.mubr.f32.gmra.mrb[0].mxu0 %v1125
    %v1202 = vpop.f32.mrb[0].mxu0
    %v1203 = vadd.f32 0.0, %v1202
    %v1204 = vpop.f32.mrb[0].mxu0
    %1205 = vdwg.mxu0
    %1206 = vrot.lane.b32.xlu0 %v1025, 96
    %v1207 = vpop.permute.xlu0 %1206
    %1208 = vrot.lane.b32.xlu0 %v1027, 96
    %v1209 = vpop.permute.xlu0 %1208
    %v1210 = vsel %vm181, %v1025, 0
    %v1212 = vsel %vm181, %v1027, 0
    %v1214 = vsel %vm181, %v1207, 0
    %v1216 = vsel %vm181, %v1209, 0
    %1218 = vmatprep.subr.mxu0 0.0
    %1219 = vmatpush1.xpose.msra.mxu0 %v1214
    %1220 = vmatprep.subr.mxu0 0.0
    %1221 = vmatpush1.xpose.msra.mxu0 %v1216
    %1222 = vmatprep.subr.mxu0 0.0
    %1223 = vmatpush1.xpose.msra.mxu0 0.0
    %1224 = vmatprep.subr.mxu0 0.0
    %1225 = vmatpush1.xpose.msra.mxu0 0.0
    %1226 = vmatprep.subr.mxu0 0.0
    %1227 = vmatpush1.xpose.msra.mxu0 0.0
    %1228 = vmatprep.subr.mxu0 0.0
    %1229 = vmatpush1.xpose.msra.mxu0 0.0
    %1230 = vmatprep.subr.mxu0 0.0
    %1231 = vmatpush1.xpose.msra.mxu0 0.0
    %1232 = vmatprep.subr.mxu0 0.0
    %1233 = vmatpush1.xpose.msra.mxu0 0.0
    %1234 = vmatprep.subr.mxu0 0.0
    %1235 = vmatpush1.xpose.msra.mxu0 0.0
    %1236 = vmatprep.subr.mxu0 0.0
    %1237 = vmatpush1.xpose.msra.mxu0 0.0
    %1238 = vmatprep.subr.mxu0 0.0
    %1239 = vmatpush1.xpose.msra.mxu0 0.0
    %1240 = vmatprep.subr.mxu0 0.0
    %1241 = vmatpush1.xpose.msra.mxu0 0.0
    %1242 = vmatprep.subr.mxu0 0.0
    %1243 = vmatpush1.xpose.msra.mxu0 0.0
    %1244 = vmatprep.subr.mxu0 0.0
    %1245 = vmatpush1.xpose.msra.mxu0 0.0
    %1246 = vmatprep.subr.mxu0 0.0
    %1247 = vmatpush1.xpose.msra.mxu0 0.0
    %1248 = vmatprep.subr.mxu0 0.0
    %1249 = vmatpush1.xpose.msra.mxu0 0.0
    %1250 = vmatprep.subr.mxu0 0.0
    %1251 = vmatpush1.xpose.msra.mxu0 0.0
    %1252 = vmatprep.subr.mxu0 0.0
    %1253 = vmatpush1.xpose.msra.mxu0 0.0
    %1254 = vmatprep.subr.mxu0 0.0
    %1255 = vmatpush1.xpose.msra.mxu0 0.0
    %1256 = vmatprep.subr.mxu0 0.0
    %1257 = vmatpush1.xpose.msra.mxu0 0.0
    %1258 = vmatprep.subr.mxu0 0.0
    %1259 = vmatpush1.xpose.msra.mxu0 0.0
    %1260 = vmatprep.subr.mxu0 0.0
    %1261 = vmatpush1.xpose.msra.mxu0 0.0
    %1262 = vmatprep.subr.mxu0 0.0
    %1263 = vmatpush1.xpose.msra.mxu0 0.0
    %1264 = vmatprep.subr.mxu0 0.0
    %1265 = vmatpush1.xpose.msra.mxu0 0.0
    %1266 = vmatprep.subr.mxu0 0.0
    %1267 = vmatpush1.xpose.msra.mxu0 0.0
    %1268 = vmatprep.subr.mxu0 0.0
    %1269 = vmatpush1.xpose.msra.mxu0 0.0
    %1270 = vmatprep.subr.mxu0 0.0
    %1271 = vmatpush1.xpose.msra.mxu0 0.0
    %1272 = vmatprep.subr.mxu0 0.0
    %1273 = vmatpush1.xpose.msra.mxu0 0.0
    %1274 = vmatprep.subr.mxu0 0.0
    %1275 = vmatpush1.xpose.msra.mxu0 0.0
    %1276 = vmatprep.subr.mxu0 0.0
    %1277 = vmatpush1.xpose.msra.mxu0 0.0
    %1278 = vmatprep.subr.mxu0 0.0
    %1279 = vmatpush1.xpose.msra.mxu0 0.0
    %1280 = vmatprep.subr.mxu0 0.0
    %1281 = vmatpush1.xpose.msra.mxu0 0.0
    %1282 = vmatprep.mubr.f32.mxu0 0.0
    %1283 = vmatmul.mubr.f32.gmra.mrb[0].mxu0 %v1210
    %v1284 = vpop.f32.mrb[0].mxu0
    %v1285 = vadd.f32 0.0, %v1284
    %v1286 = vpop.f32.mrb[0].mxu0
    %1287 = vmatprep.mubr.f32.mxu0 0.0
    %1288 = vmatmul.mubr.f32.gmra.mrb[0].mxu0 %v1212
    %v1289 = vpop.f32.mrb[0].mxu0
    %v1290 = vadd.f32 0.0, %v1289
    %v1291 = vpop.f32.mrb[0].mxu0
    %1292 = vdwg.mxu0
    %1293 = vrot.lane.b32.xlu0 %v1029, 96
    %v1294 = vpop.permute.xlu0 %1293
    %1295 = vrot.lane.b32.xlu0 %v1031, 96
    %v1296 = vpop.permute.xlu0 %1295
    %v1297 = vsel %vm181, %v1029, 0
    %v1299 = vsel %vm181, %v1031, 0
    %v1301 = vsel %vm181, %v1294, 0
    %v1303 = vsel %vm181, %v1296, 0
    %1305 = vmatprep.subr.mxu0 0.0
    %1306 = vmatpush1.xpose.msra.mxu0 %v1301
    %1307 = vmatprep.subr.mxu0 0.0
    %1308 = vmatpush1.xpose.msra.mxu0 %v1303
    %1309 = vmatprep.subr.mxu0 0.0
    %1310 = vmatpush1.xpose.msra.mxu0 0.0
    %1311 = vmatprep.subr.mxu0 0.0
    %1312 = vmatpush1.xpose.msra.mxu0 0.0
    %1313 = vmatprep.subr.mxu0 0.0
    %1314 = vmatpush1.xpose.msra.mxu0 0.0
    %1315 = vmatprep.subr.mxu0 0.0
    %1316 = vmatpush1.xpose.msra.mxu0 0.0
    %1317 = vmatprep.subr.mxu0 0.0
    %1318 = vmatpush1.xpose.msra.mxu0 0.0
    %1319 = vmatprep.subr.mxu0 0.0
    %1320 = vmatpush1.xpose.msra.mxu0 0.0
    %1321 = vmatprep.subr.mxu0 0.0
    %1322 = vmatpush1.xpose.msra.mxu0 0.0
    %1323 = vmatprep.subr.mxu0 0.0
    %1324 = vmatpush1.xpose.msra.mxu0 0.0
    %1325 = vmatprep.subr.mxu0 0.0
    %1326 = vmatpush1.xpose.msra.mxu0 0.0
    %1327 = vmatprep.subr.mxu0 0.0
    %1328 = vmatpush1.xpose.msra.mxu0 0.0
    %1329 = vmatprep.subr.mxu0 0.0
    %1330 = vmatpush1.xpose.msra.mxu0 0.0
    %1331 = vmatprep.subr.mxu0 0.0
    %1332 = vmatpush1.xpose.msra.mxu0 0.0
    %1333 = vmatprep.subr.mxu0 0.0
    %1334 = vmatpush1.xpose.msra.mxu0 0.0
    %1335 = vmatprep.subr.mxu0 0.0
    %1336 = vmatpush1.xpose.msra.mxu0 0.0
    %1337 = vmatprep.subr.mxu0 0.0
    %1338 = vmatpush1.xpose.msra.mxu0 0.0
    %1339 = vmatprep.subr.mxu0 0.0
    %1340 = vmatpush1.xpose.msra.mxu0 0.0
    %1341 = vmatprep.subr.mxu0 0.0
    %1342 = vmatpush1.xpose.msra.mxu0 0.0
    %1343 = vmatprep.subr.mxu0 0.0
    %1344 = vmatpush1.xpose.msra.mxu0 0.0
    %1345 = vmatprep.subr.mxu0 0.0
    %1346 = vmatpush1.xpose.msra.mxu0 0.0
    %1347 = vmatprep.subr.mxu0 0.0
    %1348 = vmatpush1.xpose.msra.mxu0 0.0
    %1349 = vmatprep.subr.mxu0 0.0
    %1350 = vmatpush1.xpose.msra.mxu0 0.0
    %1351 = vmatprep.subr.mxu0 0.0
    %1352 = vmatpush1.xpose.msra.mxu0 0.0
    %1353 = vmatprep.subr.mxu0 0.0
    %1354 = vmatpush1.xpose.msra.mxu0 0.0
    %1355 = vmatprep.subr.mxu0 0.0
    %1356 = vmatpush1.xpose.msra.mxu0 0.0
    %1357 = vmatprep.subr.mxu0 0.0
    %1358 = vmatpush1.xpose.msra.mxu0 0.0
    %1359 = vmatprep.subr.mxu0 0.0
    %1360 = vmatpush1.xpose.msra.mxu0 0.0
    %1361 = vmatprep.subr.mxu0 0.0
    %1362 = vmatpush1.xpose.msra.mxu0 0.0
    %1363 = vmatprep.subr.mxu0 0.0
    %1364 = vmatpush1.xpose.msra.mxu0 0.0
    %1365 = vmatprep.subr.mxu0 0.0
    %1366 = vmatpush1.xpose.msra.mxu0 0.0
    %1367 = vmatprep.subr.mxu0 0.0
    %1368 = vmatpush1.xpose.msra.mxu0 0.0
    %1369 = vmatprep.mubr.f32.mxu0 0.0
    %1370 = vmatmul.mubr.f32.gmra.mrb[0].mxu0 %v1297
    %v1371 = vpop.f32.mrb[0].mxu0
    %v1372 = vadd.f32 0.0, %v1371
    %v1373 = vpop.f32.mrb[0].mxu0
    %1374 = vmatprep.mubr.f32.mxu0 0.0
    %1375 = vmatmul.mubr.f32.gmra.mrb[0].mxu0 %v1299
    %v1376 = vpop.f32.mrb[0].mxu0
    %v1377 = vadd.f32 0.0, %v1376
    %v1378 = vpop.f32.mrb[0].mxu0
    %1379 = vdwg.mxu0
    %s1380 = scalar_lea.vmem %s15, 64
    %1381 = vst.msk [vmem:[%s1380] sm:$0xff] %vm526, %v1111
    %1382 = vst.msk [vmem:[%s1380 + $0x8] sm:$0xff] %vm526, %v1116
    %1383 = vst.msk [vmem:[%s1380 + $0x10] sm:$0xff] %vm526, %v1198
    %1384 = vst.msk [vmem:[%s1380 + $0x18] sm:$0xff] %vm526, %v1203
    %1385 = vst.msk [vmem:[%s1380 + $0x20] sm:$0xff] %vm526, %v1285
    %1386 = vst.msk [vmem:[%s1380 + $0x28] sm:$0xff] %vm526, %v1290
    %1387 = vst.msk [vmem:[%s1380 + $0x30] sm:$0xff] %vm526, %v1372
    %1388 = vst.msk [vmem:[%s1380 + $0x38] sm:$0xff] %vm526, %v1377
    %v1389 = vld [vmem:[%s1] sm:$0xff]
    %v1390 = vld [vmem:[%s1 + $0x8] sm:$0xff]
    %vm1391 = vcmp.gt.f32.partialorder %v1389, 0.0
    %vm1392 = vcmp.gt.f32.partialorder %v1390, 0.0
    %v1393 = vsel %vm1391, 1, 0
    %v1394 = vsel %vm1392, 1, 0
    %vm1395 = vcmp.eq.s32.totalorder %v1393, 1
    %vm1396 = vcmp.eq.s32.totalorder %v1394, 1
    %v1397 = vsel %vm1395, %v1111, -4.2949673e+09
    %v1398 = vsel %vm1396, %v1116, -4.2949673e+09
    %v1399 = vsel %vm1395, %v1198, -4.2949673e+09
    %v1400 = vsel %vm1396, %v1203, -4.2949673e+09
    %v1401 = vsel %vm1395, %v1285, -4.2949673e+09
    %v1402 = vsel %vm1396, %v1290, -4.2949673e+09
    %v1403 = vsel %vm1395, %v1372, -4.2949673e+09
    %v1404 = vsel %vm1396, %v1377, -4.2949673e+09
    %v1405 = vsel %vm526, %v1397, -inf
    %1406 = vmax.xlane.f32.xlu0 %v1405
    %v1407 = vpop.xlane.xlu0 %1406
    %v1408 = vsel %vm526, %v1398, -inf
    %1409 = vmax.xlane.f32.xlu0 %v1408
    %v1410 = vpop.xlane.xlu0 %1409
    %v1411 = vsel %vm526, %v1399, -inf
    %1412 = vmax.xlane.f32.xlu0 %v1411
    %v1413 = vpop.xlane.xlu0 %1412
    %v1414 = vsel %vm526, %v1400, -inf
    %1415 = vmax.xlane.f32.xlu0 %v1414
    %v1416 = vpop.xlane.xlu0 %1415
    %v1417 = vsel %vm526, %v1401, -inf
    %1418 = vmax.xlane.f32.xlu0 %v1417
    %v1419 = vpop.xlane.xlu0 %1418
    %v1420 = vsel %vm526, %v1402, -inf
    %1421 = vmax.xlane.f32.xlu0 %v1420
    %v1422 = vpop.xlane.xlu0 %1421
    %v1423 = vsel %vm526, %v1403, -inf
    %1424 = vmax.xlane.f32.xlu0 %v1423
    %v1425 = vpop.xlane.xlu0 %1424
    %v1426 = vsel %vm526, %v1404, -inf
    %1427 = vmax.xlane.f32.xlu0 %v1426
    %v1428 = vpop.xlane.xlu0 %1427
    %v1429 = vsub.f32 %v1397, %v1407
    %v1430 = vsub.f32 %v1398, %v1410
    %v1431 = vsub.f32 %v1399, %v1413
    %v1432 = vsub.f32 %v1400, %v1416
    %v1433 = vsub.f32 %v1401, %v1419
    %v1434 = vsub.f32 %v1402, %v1422
    %v1435 = vsub.f32 %v1403, %v1425
    %v1436 = vsub.f32 %v1404, %v1428
    %v1437 = vmul.f32 %v1429, 1.442695
    %v1438 = vpow.pop %v1437
    %v1439 = vmul.f32 %v1430, 1.442695
    %v1440 = vpow.pop %v1439
    %v1441 = vmul.f32 %v1431, 1.442695
    %v1442 = vpow.pop %v1441
    %v1443 = vmul.f32 %v1432, 1.442695
    %v1444 = vpow.pop %v1443
    %v1445 = vmul.f32 %v1433, 1.442695
    %v1446 = vpow.pop %v1445
    %v1447 = vmul.f32 %v1434, 1.442695
    %v1448 = vpow.pop %v1447
    %v1449 = vmul.f32 %v1435, 1.442695
    %v1450 = vpow.pop %v1449
    %v1451 = vmul.f32 %v1436, 1.442695
    %v1452 = vpow.pop %v1451
    %v1453 = vsel %vm526, %v1438, 0.0
    %1454 = vadd.xlane.f32.xlu0 %v1453
    %v1455 = vpop.xlane.xlu0 %1454
    %v1456 = vsel %vm526, %v1440, 0.0
    %1457 = vadd.xlane.f32.xlu0 %v1456
    %v1458 = vpop.xlane.xlu0 %1457
    %v1459 = vsel %vm526, %v1442, 0.0
    %1460 = vadd.xlane.f32.xlu0 %v1459
    %v1461 = vpop.xlane.xlu0 %1460
    %v1462 = vsel %vm526, %v1444, 0.0
    %1463 = vadd.xlane.f32.xlu0 %v1462
    %v1464 = vpop.xlane.xlu0 %1463
    %v1465 = vsel %vm526, %v1446, 0.0
    %1466 = vadd.xlane.f32.xlu0 %v1465
    %v1467 = vpop.xlane.xlu0 %1466
    %v1468 = vsel %vm526, %v1448, 0.0
    %1469 = vadd.xlane.f32.xlu0 %v1468
    %v1470 = vpop.xlane.xlu0 %1469
    %v1471 = vsel %vm526, %v1450, 0.0
    %1472 = vadd.xlane.f32.xlu0 %v1471
    %v1473 = vpop.xlane.xlu0 %1472
    %v1474 = vsel %vm526, %v1452, 0.0
    %1475 = vadd.xlane.f32.xlu0 %v1474
    %v1476 = vpop.xlane.xlu0 %1475
    %v1477 = vrcp.pop %v1455
    %v1478 = vmul.f32 %v1438, %v1477
    %v1479 = vrcp.pop %v1458
    %v1480 = vmul.f32 %v1440, %v1479
    %v1481 = vrcp.pop %v1461
    %v1482 = vmul.f32 %v1442, %v1481
    %v1483 = vrcp.pop %v1464
    %v1484 = vmul.f32 %v1444, %v1483
    %v1485 = vrcp.pop %v1467
    %v1486 = vmul.f32 %v1446, %v1485
    %v1487 = vrcp.pop %v1470
    %v1488 = vmul.f32 %v1448, %v1487
    %v1489 = vrcp.pop %v1473
    %v1490 = vmul.f32 %v1450, %v1489
    %v1491 = vrcp.pop %v1476
    %v1492 = vmul.f32 %v1452, %v1491
    %1493 = vrot.lane.b32.xlu0 %v155, 64
    %v1494 = vpop.permute.xlu0 %1493
    %1495 = vrot.lane.b32.xlu0 %v160, 64
    %v1496 = vpop.permute.xlu0 %1495
    %v1500 = vsel %vm526, %v1478, 0
    %v1503 = vsel %vm526, %v1480, 0
    %1505 = vmatprep.subr.mxu0 0.0
    %1506 = vmatpush1.msra.mxu0 %v1494
    %1507 = vmatprep.subr.mxu0 0.0
    %1508 = vmatpush1.msra.mxu0 %v1496
    %1509 = vmatprep.subr.mxu0 0.0
    %1510 = vmatpush1.msra.mxu0 0.0
    %1511 = vmatprep.subr.mxu0 0.0
    %1512 = vmatpush1.msra.mxu0 0.0
    %1513 = vmatprep.subr.mxu0 0.0
    %1514 = vmatpush1.msra.mxu0 0.0
    %1515 = vmatprep.subr.mxu0 0.0
    %1516 = vmatpush1.msra.mxu0 0.0
    %1517 = vmatprep.subr.mxu0 0.0
    %1518 = vmatpush1.msra.mxu0 0.0
    %1519 = vmatprep.subr.mxu0 0.0
    %1520 = vmatpush1.msra.mxu0 0.0
    %1521 = vmatprep.subr.mxu0 0.0
    %1522 = vmatpush1.msra.mxu0 0.0
    %1523 = vmatprep.subr.mxu0 0.0
    %1524 = vmatpush1.msra.mxu0 0.0
    %1525 = vmatprep.subr.mxu0 0.0
    %1526 = vmatpush1.msra.mxu0 0.0
    %1527 = vmatprep.subr.mxu0 0.0
    %1528 = vmatpush1.msra.mxu0 0.0
    %1529 = vmatprep.subr.mxu0 0.0
    %1530 = vmatpush1.msra.mxu0 0.0
    %1531 = vmatprep.subr.mxu0 0.0
    %1532 = vmatpush1.msra.mxu0 0.0
    %1533 = vmatprep.subr.mxu0 0.0
    %1534 = vmatpush1.msra.mxu0 0.0
    %1535 = vmatprep.subr.mxu0 0.0
    %1536 = vmatpush1.msra.mxu0 0.0
    %1537 = vmatprep.subr.mxu0 0.0
    %1538 = vmatpush1.msra.mxu0 0.0
    %1539 = vmatprep.subr.mxu0 0.0
    %1540 = vmatpush1.msra.mxu0 0.0
    %1541 = vmatprep.subr.mxu0 0.0
    %1542 = vmatpush1.msra.mxu0 0.0
    %1543 = vmatprep.subr.mxu0 0.0
    %1544 = vmatpush1.msra.mxu0 0.0
    %1545 = vmatprep.subr.mxu0 0.0
    %1546 = vmatpush1.msra.mxu0 0.0
    %1547 = vmatprep.subr.mxu0 0.0
    %1548 = vmatpush1.msra.mxu0 0.0
    %1549 = vmatprep.subr.mxu0 0.0
    %1550 = vmatpush1.msra.mxu0 0.0
    %1551 = vmatprep.subr.mxu0 0.0
    %1552 = vmatpush1.msra.mxu0 0.0
    %1553 = vmatprep.subr.mxu0 0.0
    %1554 = vmatpush1.msra.mxu0 0.0
    %1555 = vmatprep.subr.mxu0 0.0
    %1556 = vmatpush1.msra.mxu0 0.0
    %1557 = vmatprep.subr.mxu0 0.0
    %1558 = vmatpush1.msra.mxu0 0.0
    %1559 = vmatprep.subr.mxu0 0.0
    %1560 = vmatpush1.msra.mxu0 0.0
    %1561 = vmatprep.subr.mxu0 0.0
    %1562 = vmatpush1.msra.mxu0 0.0
    %1563 = vmatprep.subr.mxu0 0.0
    %1564 = vmatpush1.msra.mxu0 0.0
    %1565 = vmatprep.subr.mxu0 0.0
    %1566 = vmatpush1.msra.mxu0 0.0
    %1567 = vmatprep.subr.mxu0 0.0
    %1568 = vmatpush1.msra.mxu0 0.0
    %1569 = vmatprep.mubr.f32.mxu0 0.0
    %1570 = vmatmul.mubr.f32.gmra.mrb[0].mxu0 %v1500
    %v1571 = vpop.f32.mrb[0].mxu0
    %v1572 = vadd.f32 0.0, %v1571
    %v1573 = vpop.f32.mrb[0].mxu0
    %1574 = vmatprep.mubr.f32.mxu0 0.0
    %1575 = vmatmul.mubr.f32.gmra.mrb[0].mxu0 %v1503
    %v1576 = vpop.f32.mrb[0].mxu0
    %v1577 = vadd.f32 0.0, %v1576
    %v1578 = vpop.f32.mrb[0].mxu0
    %1579 = vdwg.mxu0
    %1580 = vrot.lane.b32.xlu0 %v1021, 64
    %v1581 = vpop.permute.xlu0 %1580
    %1582 = vrot.lane.b32.xlu0 %v1023, 64
    %v1583 = vpop.permute.xlu0 %1582
    %v1587 = vsel %vm526, %v1482, 0
    %v1590 = vsel %vm526, %v1484, 0
    %1592 = vmatprep.subr.mxu0 0.0
    %1593 = vmatpush1.msra.mxu0 %v1581
    %1594 = vmatprep.subr.mxu0 0.0
    %1595 = vmatpush1.msra.mxu0 %v1583
    %1596 = vmatprep.subr.mxu0 0.0
    %1597 = vmatpush1.msra.mxu0 0.0
    %1598 = vmatprep.subr.mxu0 0.0
    %1599 = vmatpush1.msra.mxu0 0.0
    %1600 = vmatprep.subr.mxu0 0.0
    %1601 = vmatpush1.msra.mxu0 0.0
    %1602 = vmatprep.subr.mxu0 0.0
    %1603 = vmatpush1.msra.mxu0 0.0
    %1604 = vmatprep.subr.mxu0 0.0
    %1605 = vmatpush1.msra.mxu0 0.0
    %1606 = vmatprep.subr.mxu0 0.0
    %1607 = vmatpush1.msra.mxu0 0.0
    %1608 = vmatprep.subr.mxu0 0.0
    %1609 = vmatpush1.msra.mxu0 0.0
    %1610 = vmatprep.subr.mxu0 0.0
    %1611 = vmatpush1.msra.mxu0 0.0
    %1612 = vmatprep.subr.mxu0 0.0
    %1613 = vmatpush1.msra.mxu0 0.0
    %1614 = vmatprep.subr.mxu0 0.0
    %1615 = vmatpush1.msra.mxu0 0.0
    %1616 = vmatprep.subr.mxu0 0.0
    %1617 = vmatpush1.msra.mxu0 0.0
    %1618 = vmatprep.subr.mxu0 0.0
    %1619 = vmatpush1.msra.mxu0 0.0
    %1620 = vmatprep.subr.mxu0 0.0
    %1621 = vmatpush1.msra.mxu0 0.0
    %1622 = vmatprep.subr.mxu0 0.0
    %1623 = vmatpush1.msra.mxu0 0.0
    %1624 = vmatprep.subr.mxu0 0.0
    %1625 = vmatpush1.msra.mxu0 0.0
    %1626 = vmatprep.subr.mxu0 0.0
    %1627 = vmatpush1.msra.mxu0 0.0
    %1628 = vmatprep.subr.mxu0 0.0
    %1629 = vmatpush1.msra.mxu0 0.0
    %1630 = vmatprep.subr.mxu0 0.0
    %1631 = vmatpush1.msra.mxu0 0.0
    %1632 = vmatprep.subr.mxu0 0.0
    %1633 = vmatpush1.msra.mxu0 0.0
    %1634 = vmatprep.subr.mxu0 0.0
    %1635 = vmatpush1.msra.mxu0 0.0
    %1636 = vmatprep.subr.mxu0 0.0
    %1637 = vmatpush1.msra.mxu0 0.0
    %1638 = vmatprep.subr.mxu0 0.0
    %1639 = vmatpush1.msra.mxu0 0.0
    %1640 = vmatprep.subr.mxu0 0.0
    %1641 = vmatpush1.msra.mxu0 0.0
    %1642 = vmatprep.subr.mxu0 0.0
    %1643 = vmatpush1.msra.mxu0 0.0
    %1644 = vmatprep.subr.mxu0 0.0
    %1645 = vmatpush1.msra.mxu0 0.0
    %1646 = vmatprep.subr.mxu0 0.0
    %1647 = vmatpush1.msra.mxu0 0.0
    %1648 = vmatprep.subr.mxu0 0.0
    %1649 = vmatpush1.msra.mxu0 0.0
    %1650 = vmatprep.subr.mxu0 0.0
    %1651 = vmatpush1.msra.mxu0 0.0
    %1652 = vmatprep.subr.mxu0 0.0
    %1653 = vmatpush1.msra.mxu0 0.0
    %1654 = vmatprep.subr.mxu0 0.0
    %1655 = vmatpush1.msra.mxu0 0.0
    %1656 = vmatprep.mubr.f32.mxu0 0.0
    %1657 = vmatmul.mubr.f32.gmra.mrb[0].mxu0 %v1587
    %v1658 = vpop.f32.mrb[0].mxu0
    %v1659 = vadd.f32 0.0, %v1658
    %v1660 = vpop.f32.mrb[0].mxu0
    %1661 = vmatprep.mubr.f32.mxu0 0.0
    %1662 = vmatmul.mubr.f32.gmra.mrb[0].mxu0 %v1590
    %v1663 = vpop.f32.mrb[0].mxu0
    %v1664 = vadd.f32 0.0, %v1663
    %v1665 = vpop.f32.mrb[0].mxu0
    %1666 = vdwg.mxu0
    %1667 = vrot.lane.b32.xlu0 %v1025, 64
    %v1668 = vpop.permute.xlu0 %1667
    %1669 = vrot.lane.b32.xlu0 %v1027, 64
    %v1670 = vpop.permute.xlu0 %1669
    %v1674 = vsel %vm526, %v1486, 0
    %v1677 = vsel %vm526, %v1488, 0
    %1679 = vmatprep.subr.mxu0 0.0
    %1680 = vmatpush1.msra.mxu0 %v1668
    %1681 = vmatprep.subr.mxu0 0.0
    %1682 = vmatpush1.msra.mxu0 %v1670
    %1683 = vmatprep.subr.mxu0 0.0
    %1684 = vmatpush1.msra.mxu0 0.0
    %1685 = vmatprep.subr.mxu0 0.0
    %1686 = vmatpush1.msra.mxu0 0.0
    %1687 = vmatprep.subr.mxu0 0.0
    %1688 = vmatpush1.msra.mxu0 0.0
    %1689 = vmatprep.subr.mxu0 0.0
    %1690 = vmatpush1.msra.mxu0 0.0
    %1691 = vmatprep.subr.mxu0 0.0
    %1692 = vmatpush1.msra.mxu0 0.0
    %1693 = vmatprep.subr.mxu0 0.0
    %1694 = vmatpush1.msra.mxu0 0.0
    %1695 = vmatprep.subr.mxu0 0.0
    %1696 = vmatpush1.msra.mxu0 0.0
    %1697 = vmatprep.subr.mxu0 0.0
    %1698 = vmatpush1.msra.mxu0 0.0
    %1699 = vmatprep.subr.mxu0 0.0
    %1700 = vmatpush1.msra.mxu0 0.0
    %1701 = vmatprep.subr.mxu0 0.0
    %1702 = vmatpush1.msra.mxu0 0.0
    %1703 = vmatprep.subr.mxu0 0.0
    %1704 = vmatpush1.msra.mxu0 0.0
    %1705 = vmatprep.subr.mxu0 0.0
    %1706 = vmatpush1.msra.mxu0 0.0
    %1707 = vmatprep.subr.mxu0 0.0
    %1708 = vmatpush1.msra.mxu0 0.0
    %1709 = vmatprep.subr.mxu0 0.0
    %1710 = vmatpush1.msra.mxu0 0.0
    %1711 = vmatprep.subr.mxu0 0.0
    %1712 = vmatpush1.msra.mxu0 0.0
    %1713 = vmatprep.subr.mxu0 0.0
    %1714 = vmatpush1.msra.mxu0 0.0
    %1715 = vmatprep.subr.mxu0 0.0
    %1716 = vmatpush1.msra.mxu0 0.0
    %1717 = vmatprep.subr.mxu0 0.0
    %1718 = vmatpush1.msra.mxu0 0.0
    %1719 = vmatprep.subr.mxu0 0.0
    %1720 = vmatpush1.msra.mxu0 0.0
    %1721 = vmatprep.subr.mxu0 0.0
    %1722 = vmatpush1.msra.mxu0 0.0
    %1723 = vmatprep.subr.mxu0 0.0
    %1724 = vmatpush1.msra.mxu0 0.0
    %1725 = vmatprep.subr.mxu0 0.0
    %1726 = vmatpush1.msra.mxu0 0.0
    %1727 = vmatprep.subr.mxu0 0.0
    %1728 = vmatpush1.msra.mxu0 0.0
    %1729 = vmatprep.subr.mxu0 0.0
    %1730 = vmatpush1.msra.mxu0 0.0
    %1731 = vmatprep.subr.mxu0 0.0
    %1732 = vmatpush1.msra.mxu0 0.0
    %1733 = vmatprep.subr.mxu0 0.0
    %1734 = vmatpush1.msra.mxu0 0.0
    %1735 = vmatprep.subr.mxu0 0.0
    %1736 = vmatpush1.msra.mxu0 0.0
    %1737 = vmatprep.subr.mxu0 0.0
    %1738 = vmatpush1.msra.mxu0 0.0
    %1739 = vmatprep.subr.mxu0 0.0
    %1740 = vmatpush1.msra.mxu0 0.0
    %1741 = vmatprep.subr.mxu0 0.0
    %1742 = vmatpush1.msra.mxu0 0.0
    %1743 = vmatprep.mubr.f32.mxu0 0.0
    %1744 = vmatmul.mubr.f32.gmra.mrb[0].mxu0 %v1674
    %v1745 = vpop.f32.mrb[0].mxu0
    %v1746 = vadd.f32 0.0, %v1745
    %v1747 = vpop.f32.mrb[0].mxu0
    %1748 = vmatprep.mubr.f32.mxu0 0.0
    %1749 = vmatmul.mubr.f32.gmra.mrb[0].mxu0 %v1677
    %v1750 = vpop.f32.mrb[0].mxu0
    %v1751 = vadd.f32 0.0, %v1750
    %v1752 = vpop.f32.mrb[0].mxu0
    %1753 = vdwg.mxu0
    %1754 = vrot.lane.b32.xlu0 %v1029, 64
    %v1755 = vpop.permute.xlu0 %1754
    %1756 = vrot.lane.b32.xlu0 %v1031, 64
    %v1757 = vpop.permute.xlu0 %1756
    %v1761 = vsel %vm526, %v1490, 0
    %v1764 = vsel %vm526, %v1492, 0
    %1766 = vmatprep.subr.mxu0 0.0
    %1767 = vmatpush1.msra.mxu0 %v1755
    %1768 = vmatprep.subr.mxu0 0.0
    %1769 = vmatpush1.msra.mxu0 %v1757
    %1770 = vmatprep.subr.mxu0 0.0
    %1771 = vmatpush1.msra.mxu0 0.0
    %1772 = vmatprep.subr.mxu0 0.0
    %1773 = vmatpush1.msra.mxu0 0.0
    %1774 = vmatprep.subr.mxu0 0.0
    %1775 = vmatpush1.msra.mxu0 0.0
    %1776 = vmatprep.subr.mxu0 0.0
    %1777 = vmatpush1.msra.mxu0 0.0
    %1778 = vmatprep.subr.mxu0 0.0
    %1779 = vmatpush1.msra.mxu0 0.0
    %1780 = vmatprep.subr.mxu0 0.0
    %1781 = vmatpush1.msra.mxu0 0.0
    %1782 = vmatprep.subr.mxu0 0.0
    %1783 = vmatpush1.msra.mxu0 0.0
    %1784 = vmatprep.subr.mxu0 0.0
    %1785 = vmatpush1.msra.mxu0 0.0
    %1786 = vmatprep.subr.mxu0 0.0
    %1787 = vmatpush1.msra.mxu0 0.0
    %1788 = vmatprep.subr.mxu0 0.0
    %1789 = vmatpush1.msra.mxu0 0.0
    %1790 = vmatprep.subr.mxu0 0.0
    %1791 = vmatpush1.msra.mxu0 0.0
    %1792 = vmatprep.subr.mxu0 0.0
    %1793 = vmatpush1.msra.mxu0 0.0
    %1794 = vmatprep.subr.mxu0 0.0
    %1795 = vmatpush1.msra.mxu0 0.0
    %1796 = vmatprep.subr.mxu0 0.0
    %1797 = vmatpush1.msra.mxu0 0.0
    %1798 = vmatprep.subr.mxu0 0.0
    %1799 = vmatpush1.msra.mxu0 0.0
    %1800 = vmatprep.subr.mxu0 0.0
    %1801 = vmatpush1.msra.mxu0 0.0
    %1802 = vmatprep.subr.mxu0 0.0
    %1803 = vmatpush1.msra.mxu0 0.0
    %1804 = vmatprep.subr.mxu0 0.0
    %1805 = vmatpush1.msra.mxu0 0.0
    %1806 = vmatprep.subr.mxu0 0.0
    %1807 = vmatpush1.msra.mxu0 0.0
    %1808 = vmatprep.subr.mxu0 0.0
    %1809 = vmatpush1.msra.mxu0 0.0
    %1810 = vmatprep.subr.mxu0 0.0
    %1811 = vmatpush1.msra.mxu0 0.0
    %1812 = vmatprep.subr.mxu0 0.0
    %1813 = vmatpush1.msra.mxu0 0.0
    %1814 = vmatprep.subr.mxu0 0.0
    %1815 = vmatpush1.msra.mxu0 0.0
    %1816 = vmatprep.subr.mxu0 0.0
    %1817 = vmatpush1.msra.mxu0 0.0
    %1818 = vmatprep.subr.mxu0 0.0
    %1819 = vmatpush1.msra.mxu0 0.0
    %1820 = vmatprep.subr.mxu0 0.0
    %1821 = vmatpush1.msra.mxu0 0.0
    %1822 = vmatprep.subr.mxu0 0.0
    %1823 = vmatpush1.msra.mxu0 0.0
    %1824 = vmatprep.subr.mxu0 0.0
    %1825 = vmatpush1.msra.mxu0 0.0
    %1826 = vmatprep.subr.mxu0 0.0
    %1827 = vmatpush1.msra.mxu0 0.0
    %1828 = vmatprep.subr.mxu0 0.0
    %1829 = vmatpush1.msra.mxu0 0.0
    %1830 = vmatprep.mubr.f32.mxu0 0.0
    %1831 = vmatmul.mubr.f32.gmra.mrb[0].mxu0 %v1761
    %v1832 = vpop.f32.mrb[0].mxu0
    %v1833 = vadd.f32 0.0, %v1832
    %v1834 = vpop.f32.mrb[0].mxu0
    %1835 = vmatprep.mubr.f32.mxu0 0.0
    %1836 = vmatmul.mubr.f32.gmra.mrb[0].mxu0 %v1764
    %v1837 = vpop.f32.mrb[0].mxu0
    %v1838 = vadd.f32 0.0, %v1837
    %v1839 = vpop.f32.mrb[0].mxu0
    %1840 = vdwg.mxu0
    %1843 = vrot.lane.b32.xlu0 %v1659, 8
    %v1844 = vpop.permute.xlu0 %1843
    %1845 = vrot.lane.b32.xlu0 %v1664, 8
    %v1846 = vpop.permute.xlu0 %1845
    %1851 = vrot.lane.b32.xlu0 %v1746, 16
    %v1852 = vpop.permute.xlu0 %1851
    %1853 = vrot.lane.b32.xlu0 %v1751, 16
    %v1854 = vpop.permute.xlu0 %1853
    %1859 = vrot.lane.b32.xlu0 %v1833, 24
    %v1860 = vpop.permute.xlu0 %1859
    %1861 = vrot.lane.b32.xlu0 %v1838, 24
    %v1862 = vpop.permute.xlu0 %1861
    %v1865 = vsel %vm181, %v1572, %v1844
    %v1866 = vsel %vm181, %v1577, %v1846
    %v1867 = vsel %vm526, %v1865, %v1852
    %v1868 = vsel %vm526, %v1866, %v1854
    %v1869 = vsel %vm1015, %v1867, %v1860
    %v1870 = vsel %vm1015, %v1868, %v1862
    %v1871 = vld [vmem:[%s4] sm:$0xff]
    %v1872 = vld [vmem:[%s4 + $0x8] sm:$0xff]
    %v1873 = vld [vmem:[%s4 + $0x10] sm:$0xff]
    %v1874 = vld [vmem:[%s4 + $0x18] sm:$0xff]
    %v1875 = vld [vmem:[%s5] sm:$0x1]
    %v1877 = vlaneseq
    %v1878 = vshrl.u32 %v1877, 7
    %v1879 = vsub.s32 0, %v1878
    %v1880 = vrot.slane %v1875, %v1879
    %v1883 = vsel %vm65, %v1016, 0
    %v1886 = vsel %vm65, %v1017, 0
    %v1889 = vsel %vm65, %v1869, 0
    %v1892 = vsel %vm65, %v1870, 0
    %1894 = vmatprep.subr.mxu0 0.0
    %1895 = vmatpush1.msra.mxu0 %v1871
    %1896 = vmatprep.subr.mxu0 0.0
    %1897 = vmatpush1.msra.mxu0 %v1872
    %1898 = vmatprep.subr.mxu0 0.0
    %1899 = vmatpush1.msra.mxu0 %v1873
    %1900 = vmatprep.subr.mxu0 0.0
    %1901 = vmatpush1.msra.mxu0 %v1874
    %1902 = vmatprep.subr.mxu0 0.0
    %1903 = vmatpush1.msra.mxu0 0.0
    %1904 = vmatprep.subr.mxu0 0.0
    %1905 = vmatpush1.msra.mxu0 0.0
    %1906 = vmatprep.subr.mxu0 0.0
    %1907 = vmatpush1.msra.mxu0 0.0
    %1908 = vmatprep.subr.mxu0 0.0
    %1909 = vmatpush1.msra.mxu0 0.0
    %1910 = vmatprep.subr.mxu0 0.0
    %1911 = vmatpush1.msra.mxu0 0.0
    %1912 = vmatprep.subr.mxu0 0.0
    %1913 = vmatpush1.msra.mxu0 0.0
    %1914 = vmatprep.subr.mxu0 0.0
    %1915 = vmatpush1.msra.mxu0 0.0
    %1916 = vmatprep.subr.mxu0 0.0
    %1917 = vmatpush1.msra.mxu0 0.0
    %1918 = vmatprep.subr.mxu0 0.0
    %1919 = vmatpush1.msra.mxu0 0.0
    %1920 = vmatprep.subr.mxu0 0.0
    %1921 = vmatpush1.msra.mxu0 0.0
    %1922 = vmatprep.subr.mxu0 0.0
    %1923 = vmatpush1.msra.mxu0 0.0
    %1924 = vmatprep.subr.mxu0 0.0
    %1925 = vmatpush1.msra.mxu0 0.0
    %1926 = vmatprep.subr.mxu0 0.0
    %1927 = vmatpush1.msra.mxu0 0.0
    %1928 = vmatprep.subr.mxu0 0.0
    %1929 = vmatpush1.msra.mxu0 0.0
    %1930 = vmatprep.subr.mxu0 0.0
    %1931 = vmatpush1.msra.mxu0 0.0
    %1932 = vmatprep.subr.mxu0 0.0
    %1933 = vmatpush1.msra.mxu0 0.0
    %1934 = vmatprep.subr.mxu0 0.0
    %1935 = vmatpush1.msra.mxu0 0.0
    %1936 = vmatprep.subr.mxu0 0.0
    %1937 = vmatpush1.msra.mxu0 0.0
    %1938 = vmatprep.subr.mxu0 0.0
    %1939 = vmatpush1.msra.mxu0 0.0
    %1940 = vmatprep.subr.mxu0 0.0
    %1941 = vmatpush1.msra.mxu0 0.0
    %1942 = vmatprep.subr.mxu0 0.0
    %1943 = vmatpush1.msra.mxu0 0.0
    %1944 = vmatprep.subr.mxu0 0.0
    %1945 = vmatpush1.msra.mxu0 0.0
    %1946 = vmatprep.subr.mxu0 0.0
    %1947 = vmatpush1.msra.mxu0 0.0
    %1948 = vmatprep.subr.mxu0 0.0
    %1949 = vmatpush1.msra.mxu0 0.0
    %1950 = vmatprep.subr.mxu0 0.0
    %1951 = vmatpush1.msra.mxu0 0.0
    %1952 = vmatprep.subr.mxu0 0.0
    %1953 = vmatpush1.msra.mxu0 0.0
    %1954 = vmatprep.subr.mxu0 0.0
    %1955 = vmatpush1.msra.mxu0 0.0
    %1956 = vmatprep.subr.mxu0 0.0
    %1957 = vmatpush1.msra.mxu0 0.0
    %1958 = vmatprep.mubr.f32.mxu0 0.0
    %1959 = vmatmul.mubr.f32.gmra.mrb[0].mxu0 %v1883
    %v1960 = vpop.f32.mrb[0].mxu0
    %v1961 = vadd.f32 %v1880, %v1960
    %v1962 = vpop.f32.mrb[0].mxu0
    %1963 = vmatprep.mubr.f32.mxu0 0.0
    %1964 = vmatmul.mubr.f32.gmra.mrb[0].mxu0 %v1886
    %v1965 = vpop.f32.mrb[0].mxu0
    %v1966 = vadd.f32 %v1880, %v1965
    %v1967 = vpop.f32.mrb[0].mxu0
    %1968 = vmatprep.mubr.f32.mxu0 0.0
    %1969 = vmatmul.mubr.f32.gmra.mrb[0].mxu0 %v1889
    %v1970 = vpop.f32.mrb[0].mxu0
    %v1971 = vadd.f32 %v1880, %v1970
    %v1972 = vpop.f32.mrb[0].mxu0
    %1973 = vmatprep.mubr.f32.mxu0 0.0
    %1974 = vmatmul.mubr.f32.gmra.mrb[0].mxu0 %v1892
    %v1975 = vpop.f32.mrb[0].mxu0
    %v1976 = vadd.f32 %v1880, %v1975
    %v1977 = vpop.f32.mrb[0].mxu0
    %1978 = vdwg.mxu0
    %v1979 = vadd.f32 %v1961, %v50
    %v1980 = vadd.f32 %v1966, %v51
    %v1981 = vadd.f32 %v1971, %v52
    %v1982 = vadd.f32 %v1976, %v53
    %v1983 = vld [vmem:[%s6] sm:$0x1]
    %v1984 = vld [vmem:[%s7] sm:$0x1]
    %v1985 = vsel %vm65, %v1979, 0.0
    %1986 = vadd.xlane.f32.xlu0 %v1985
    %v1987 = vpop.xlane.xlu0 %1986
    %v1988 = vsel %vm65, %v1980, 0.0
    %1989 = vadd.xlane.f32.xlu0 %v1988
    %v1990 = vpop.xlane.xlu0 %1989
    %v1991 = vsel %vm65, %v1981, 0.0
    %1992 = vadd.xlane.f32.xlu0 %v1991
    %v1993 = vpop.xlane.xlu0 %1992
    %v1994 = vsel %vm65, %v1982, 0.0
    %1995 = vadd.xlane.f32.xlu0 %v1994
    %v1996 = vpop.xlane.xlu0 %1995
    %v1997 = vrcp.pop 32.0
    %v1998 = vmul.f32 %v1987, %v1997
    %v1999 = vmul.f32 %v1990, %v1997
    %v2000 = vmul.f32 %v1993, %v1997
    %v2001 = vmul.f32 %v1996, %v1997
    %v2002 = vsub.f32 %v1979, %v1998
    %v2003 = vsub.f32 %v1980, %v1999
    %v2004 = vsub.f32 %v1981, %v2000
    %v2005 = vsub.f32 %v1982, %v2001
    %v2006 = vmul.f32 %v2002, %v2002
    %v2007 = vmul.f32 %v2003, %v2003
    %v2008 = vmul.f32 %v2004, %v2004
    %v2009 = vmul.f32 %v2005, %v2005
    %v2010 = vsel %vm65, %v2006, 0.0
    %2011 = vadd.xlane.f32.xlu0 %v2010
    %v2012 = vpop.xlane.xlu0 %2011
    %v2013 = vsel %vm65, %v2007, 0.0
    %2014 = vadd.xlane.f32.xlu0 %v2013
    %v2015 = vpop.xlane.xlu0 %2014
    %v2016 = vsel %vm65, %v2008, 0.0
    %2017 = vadd.xlane.f32.xlu0 %v2016
    %v2018 = vpop.xlane.xlu0 %2017
    %v2019 = vsel %vm65, %v2009, 0.0
    %2020 = vadd.xlane.f32.xlu0 %v2019
    %v2021 = vpop.xlane.xlu0 %2020
    %v2022 = vmul.f32 %v2012, %v1997
    %v2023 = vmul.f32 %v2015, %v1997
    %v2024 = vmul.f32 %v2018, %v1997
    %v2025 = vmul.f32 %v2021, %v1997
    %v2026 = vadd.f32 %v2022, 1e-05
    %v2027 = vadd.f32 %v2023, 1e-05
    %v2028 = vadd.f32 %v2024, 1e-05
    %v2029 = vadd.f32 %v2025, 1e-05
    %v2030 = vrsqrt.pop %v2026
    %v2031 = vrsqrt.pop %v2027
    %v2032 = vrsqrt.pop %v2028
    %v2033 = vrsqrt.pop %v2029
    %v2034 = vmul.f32 %v2002, %v2030
    %v2035 = vmul.f32 %v2003, %v2031
    %v2036 = vmul.f32 %v2004, %v2032
    %v2037 = vmul.f32 %v2005, %v2033
    %v2039 = vlaneseq
    %v2040 = vshrl.u32 %v2039, 7
    %v2041 = vsub.s32 0, %v2040
    %v2042 = vrot.slane %v1983, %v2041
    %v2044 = vmul.f32 %v2034, %v2042
    %v2045 = vmul.f32 %v2035, %v2042
    %v2046 = vmul.f32 %v2036, %v2042
    %v2047 = vmul.f32 %v2037, %v2042
    %v2049 = vlaneseq
    %v2050 = vshrl.u32 %v2049, 7
    %v2051 = vsub.s32 0, %v2050
    %v2052 = vrot.slane %v1984, %v2051
    %v2054 = vadd.f32 %v2044, %v2052
    %v2055 = vadd.f32 %v2045, %v2052
    %v2056 = vadd.f32 %v2046, %v2052
    %v2057 = vadd.f32 %v2047, %v2052
    %v2058 = vld [vmem:[%s8] sm:$0xff]
    %v2059 = vld [vmem:[%s8 + $0x8] sm:$0xff]
    %v2060 = vld [vmem:[%s8 + $0x10] sm:$0xff]
    %v2061 = vld [vmem:[%s8 + $0x18] sm:$0xff]
    %v2062 = vld [vmem:[%s9] sm:$0x1]
    %v2064 = vlaneseq
    %v2065 = vshrl.u32 %v2064, 7
    %v2066 = vsub.s32 0, %v2065
    %v2067 = vrot.slane %v2062, %v2066
    %v2070 = vsel %vm65, %v2054, 0
    %v2073 = vsel %vm65, %v2055, 0
    %v2076 = vsel %vm65, %v2056, 0
    %v2079 = vsel %vm65, %v2057, 0
    %2081 = vmatprep.subr.mxu0 0.0
    %2082 = vmatpush1.msra.mxu0 %v2058
    %2083 = vmatprep.subr.mxu0 0.0
    %2084 = vmatpush1.msra.mxu0 %v2059
    %2085 = vmatprep.subr.mxu0 0.0
    %2086 = vmatpush1.msra.mxu0 %v2060
    %2087 = vmatprep.subr.mxu0 0.0
    %2088 = vmatpush1.msra.mxu0 %v2061
    %2089 = vmatprep.subr.mxu0 0.0
    %2090 = vmatpush1.msra.mxu0 0.0
    %2091 = vmatprep.subr.mxu0 0.0
    %2092 = vmatpush1.msra.mxu0 0.0
    %2093 = vmatprep.subr.mxu0 0.0
    %2094 = vmatpush1.msra.mxu0 0.0
    %2095 = vmatprep.subr.mxu0 0.0
    %2096 = vmatpush1.msra.mxu0 0.0
    %2097 = vmatprep.subr.mxu0 0.0
    %2098 = vmatpush1.msra.mxu0 0.0
    %2099 = vmatprep.subr.mxu0 0.0
    %2100 = vmatpush1.msra.mxu0 0.0
    %2101 = vmatprep.subr.mxu0 0.0
    %2102 = vmatpush1.msra.mxu0 0.0
    %2103 = vmatprep.subr.mxu0 0.0
    %2104 = vmatpush1.msra.mxu0 0.0
    %2105 = vmatprep.subr.mxu0 0.0
    %2106 = vmatpush1.msra.mxu0 0.0
    %2107 = vmatprep.subr.mxu0 0.0
    %2108 = vmatpush1.msra.mxu0 0.0
    %2109 = vmatprep.subr.mxu0 0.0
    %2110 = vmatpush1.msra.mxu0 0.0
    %2111 = vmatprep.subr.mxu0 0.0
    %2112 = vmatpush1.msra.mxu0 0.0
    %2113 = vmatprep.subr.mxu0 0.0
    %2114 = vmatpush1.msra.mxu0 0.0
    %2115 = vmatprep.subr.mxu0 0.0
    %2116 = vmatpush1.msra.mxu0 0.0
    %2117 = vmatprep.subr.mxu0 0.0
    %2118 = vmatpush1.msra.mxu0 0.0
    %2119 = vmatprep.subr.mxu0 0.0
    %2120 = vmatpush1.msra.mxu0 0.0
    %2121 = vmatprep.subr.mxu0 0.0
    %2122 = vmatpush1.msra.mxu0 0.0
    %2123 = vmatprep.subr.mxu0 0.0
    %2124 = vmatpush1.msra.mxu0 0.0
    %2125 = vmatprep.subr.mxu0 0.0
    %2126 = vmatpush1.msra.mxu0 0.0
    %2127 = vmatprep.subr.mxu0 0.0
    %2128 = vmatpush1.msra.mxu0 0.0
    %2129 = vmatprep.subr.mxu0 0.0
    %2130 = vmatpush1.msra.mxu0 0.0
    %2131 = vmatprep.subr.mxu0 0.0
    %2132 = vmatpush1.msra.mxu0 0.0
    %2133 = vmatprep.subr.mxu0 0.0
    %2134 = vmatpush1.msra.mxu0 0.0
    %2135 = vmatprep.subr.mxu0 0.0
    %2136 = vmatpush1.msra.mxu0 0.0
    %2137 = vmatprep.subr.mxu0 0.0
    %2138 = vmatpush1.msra.mxu0 0.0
    %2139 = vmatprep.subr.mxu0 0.0
    %2140 = vmatpush1.msra.mxu0 0.0
    %2141 = vmatprep.subr.mxu0 0.0
    %2142 = vmatpush1.msra.mxu0 0.0
    %2143 = vmatprep.subr.mxu0 0.0
    %2144 = vmatpush1.msra.mxu0 0.0
    %2145 = vmatprep.mubr.f32.mxu0 0.0
    %2146 = vmatmul.mubr.f32.gmra.mrb[0].mxu0 %v2070
    %v2147 = vpop.f32.mrb[0].mxu0
    %v2148 = vadd.f32 %v2067, %v2147
    %v2149 = vpop.f32.mrb[0].mxu0
    %2150 = vmatprep.mubr.f32.mxu0 0.0
    %2151 = vmatmul.mubr.f32.gmra.mrb[0].mxu0 %v2073
    %v2152 = vpop.f32.mrb[0].mxu0
    %v2153 = vadd.f32 %v2067, %v2152
    %v2154 = vpop.f32.mrb[0].mxu0
    %2155 = vmatprep.mubr.f32.mxu0 0.0
    %2156 = vmatmul.mubr.f32.gmra.mrb[0].mxu0 %v2076
    %v2157 = vpop.f32.mrb[0].mxu0
    %v2158 = vadd.f32 %v2067, %v2157
    %v2159 = vpop.f32.mrb[0].mxu0
    %2160 = vmatprep.mubr.f32.mxu0 0.0
    %2161 = vmatmul.mubr.f32.gmra.mrb[0].mxu0 %v2079
    %v2162 = vpop.f32.mrb[0].mxu0
    %v2163 = vadd.f32 %v2067, %v2162
    %v2164 = vpop.f32.mrb[0].mxu0
    %2165 = vdwg.mxu0
    %v2166 = vmax.f32 %v2148, 0.0
    %v2167 = vmax.f32 %v2153, 0.0
    %v2168 = vmax.f32 %v2158, 0.0
    %v2169 = vmax.f32 %v2163, 0.0
    %v2170 = vld [vmem:[%s10] sm:$0xff]
    %v2171 = vld [vmem:[%s10 + $0x8] sm:$0xff]
    %v2172 = vld [vmem:[%s10 + $0x10] sm:$0xff]
    %v2173 = vld [vmem:[%s10 + $0x18] sm:$0xff]
    %v2174 = vld [vmem:[%s10 + $0x20] sm:$0xff]
    %v2175 = vld [vmem:[%s10 + $0x28] sm:$0xff]
    %v2176 = vld [vmem:[%s10 + $0x30] sm:$0xff]
    %v2177 = vld [vmem:[%s10 + $0x38] sm:$0xff]
    %v2178 = vld [vmem:[%s11] sm:$0x1]
    %v2180 = vlaneseq
    %v2181 = vshrl.u32 %v2180, 7
    %v2182 = vsub.s32 0, %v2181
    %v2183 = vrot.slane %v2178, %v2182
    %vm2185 = vcmask 523264
    %v2187 = vsel %vm2185, %v2166, 0
    %v2190 = vsel %vm2185, %v2167, 0
    %v2193 = vsel %vm2185, %v2168, 0
    %v2196 = vsel %vm2185, %v2169, 0
    %2198 = vmatprep.subr.mxu0 0.0
    %2199 = vmatpush1.msra.mxu0 %v2170
    %2200 = vmatprep.subr.mxu0 0.0
    %2201 = vmatpush1.msra.mxu0 %v2171
    %2202 = vmatprep.subr.mxu0 0.0
    %2203 = vmatpush1.msra.mxu0 %v2172
    %2204 = vmatprep.subr.mxu0 0.0
    %2205 = vmatpush1.msra.mxu0 %v2173
    %2206 = vmatprep.subr.mxu0 0.0
    %2207 = vmatpush1.msra.mxu0 %v2174
    %2208 = vmatprep.subr.mxu0 0.0
    %2209 = vmatpush1.msra.mxu0 %v2175
    %2210 = vmatprep.subr.mxu0 0.0
    %2211 = vmatpush1.msra.mxu0 %v2176
    %2212 = vmatprep.subr.mxu0 0.0
    %2213 = vmatpush1.msra.mxu0 %v2177
    %2214 = vmatprep.subr.mxu0 0.0
    %2215 = vmatpush1.msra.mxu0 0.0
    %2216 = vmatprep.subr.mxu0 0.0
    %2217 = vmatpush1.msra.mxu0 0.0
    %2218 = vmatprep.subr.mxu0 0.0
    %2219 = vmatpush1.msra.mxu0 0.0
    %2220 = vmatprep.subr.mxu0 0.0
    %2221 = vmatpush1.msra.mxu0 0.0
    %2222 = vmatprep.subr.mxu0 0.0
    %2223 = vmatpush1.msra.mxu0 0.0
    %2224 = vmatprep.subr.mxu0 0.0
    %2225 = vmatpush1.msra.mxu0 0.0
    %2226 = vmatprep.subr.mxu0 0.0
    %2227 = vmatpush1.msra.mxu0 0.0
    %2228 = vmatprep.subr.mxu0 0.0
    %2229 = vmatpush1.msra.mxu0 0.0
    %2230 = vmatprep.subr.mxu0 0.0
    %2231 = vmatpush1.msra.mxu0 0.0
    %2232 = vmatprep.subr.mxu0 0.0
    %2233 = vmatpush1.msra.mxu0 0.0
    %2234 = vmatprep.subr.mxu0 0.0
    %2235 = vmatpush1.msra.mxu0 0.0
    %2236 = vmatprep.subr.mxu0 0.0
    %2237 = vmatpush1.msra.mxu0 0.0
    %2238 = vmatprep.subr.mxu0 0.0
    %2239 = vmatpush1.msra.mxu0 0.0
    %2240 = vmatprep.subr.mxu0 0.0
    %2241 = vmatpush1.msra.mxu0 0.0
    %2242 = vmatprep.subr.mxu0 0.0
    %2243 = vmatpush1.msra.mxu0 0.0
    %2244 = vmatprep.subr.mxu0 0.0
    %2245 = vmatpush1.msra.mxu0 0.0
    %2246 = vmatprep.subr.mxu0 0.0
    %2247 = vmatpush1.msra.mxu0 0.0
    %2248 = vmatprep.subr.mxu0 0.0
    %2249 = vmatpush1.msra.mxu0 0.0
    %2250 = vmatprep.subr.mxu0 0.0
    %2251 = vmatpush1.msra.mxu0 0.0
    %2252 = vmatprep.subr.mxu0 0.0
    %2253 = vmatpush1.msra.mxu0 0.0
    %2254 = vmatprep.subr.mxu0 0.0
    %2255 = vmatpush1.msra.mxu0 0.0
    %2256 = vmatprep.subr.mxu0 0.0
    %2257 = vmatpush1.msra.mxu0 0.0
    %2258 = vmatprep.subr.mxu0 0.0
    %2259 = vmatpush1.msra.mxu0 0.0
    %2260 = vmatprep.subr.mxu0 0.0
    %2261 = vmatpush1.msra.mxu0 0.0
    %2262 = vmatprep.mubr.f32.mxu0 0.0
    %2263 = vmatmul.mubr.f32.gmra.mrb[0].mxu0 %v2187
    %v2264 = vpop.f32.mrb[0].mxu0
    %v2265 = vadd.f32 %v2183, %v2264
    %v2266 = vpop.f32.mrb[0].mxu0
    %2267 = vmatprep.mubr.f32.mxu0 0.0
    %2268 = vmatmul.mubr.f32.gmra.mrb[0].mxu0 %v2190
    %v2269 = vpop.f32.mrb[0].mxu0
    %v2270 = vadd.f32 %v2183, %v2269
    %v2271 = vpop.f32.mrb[0].mxu0
    %2272 = vmatprep.mubr.f32.mxu0 0.0
    %2273 = vmatmul.mubr.f32.gmra.mrb[0].mxu0 %v2193
    %v2274 = vpop.f32.mrb[0].mxu0
    %v2275 = vadd.f32 %v2183, %v2274
    %v2276 = vpop.f32.mrb[0].mxu0
    %2277 = vmatprep.mubr.f32.mxu0 0.0
    %2278 = vmatmul.mubr.f32.gmra.mrb[0].mxu0 %v2196
    %v2279 = vpop.f32.mrb[0].mxu0
    %v2280 = vadd.f32 %v2183, %v2279
    %v2281 = vpop.f32.mrb[0].mxu0
    %2282 = vdwg.mxu0
    %v2283 = vadd.f32 %v2265, %v2054
    %v2284 = vadd.f32 %v2270, %v2055
    %v2285 = vadd.f32 %v2275, %v2056
    %v2286 = vadd.f32 %v2280, %v2057
    %v2287 = vld [vmem:[%s12] sm:$0x1]
    %v2288 = vld [vmem:[%s13] sm:$0x1]
    %v2289 = vsel %vm65, %v2283, 0.0
    %2290 = vadd.xlane.f32.xlu0 %v2289
    %v2291 = vpop.xlane.xlu0 %2290
    %v2292 = vsel %vm65, %v2284, 0.0
    %2293 = vadd.xlane.f32.xlu0 %v2292
    %v2294 = vpop.xlane.xlu0 %2293
    %v2295 = vsel %vm65, %v2285, 0.0
    %2296 = vadd.xlane.f32.xlu0 %v2295
    %v2297 = vpop.xlane.xlu0 %2296
    %v2298 = vsel %vm65, %v2286, 0.0
    %2299 = vadd.xlane.f32.xlu0 %v2298
    %v2300 = vpop.xlane.xlu0 %2299
    %v2301 = vmul.f32 %v2291, %v1997
    %v2302 = vmul.f32 %v2294, %v1997
    %v2303 = vmul.f32 %v2297, %v1997
    %v2304 = vmul.f32 %v2300, %v1997
    %v2305 = vsub.f32 %v2283, %v2301
    %v2306 = vsub.f32 %v2284, %v2302
    %v2307 = vsub.f32 %v2285, %v2303
    %v2308 = vsub.f32 %v2286, %v2304
    %v2309 = vmul.f32 %v2305, %v2305
    %v2310 = vmul.f32 %v2306, %v2306
    %v2311 = vmul.f32 %v2307, %v2307
    %v2312 = vmul.f32 %v2308, %v2308
    %v2313 = vsel %vm65, %v2309, 0.0
    %2314 = vadd.xlane.f32.xlu0 %v2313
    %v2315 = vpop.xlane.xlu0 %2314
    %v2316 = vsel %vm65, %v2310, 0.0
    %2317 = vadd.xlane.f32.xlu0 %v2316
    %v2318 = vpop.xlane.xlu0 %2317
    %v2319 = vsel %vm65, %v2311, 0.0
    %2320 = vadd.xlane.f32.xlu0 %v2319
    %v2321 = vpop.xlane.xlu0 %2320
    %v2322 = vsel %vm65, %v2312, 0.0
    %2323 = vadd.xlane.f32.xlu0 %v2322
    %v2324 = vpop.xlane.xlu0 %2323
    %v2325 = vmul.f32 %v2315, %v1997
    %v2326 = vmul.f32 %v2318, %v1997
    %v2327 = vmul.f32 %v2321, %v1997
    %v2328 = vmul.f32 %v2324, %v1997
    %v2329 = vadd.f32 %v2325, 1e-05
    %v2330 = vadd.f32 %v2326, 1e-05
    %v2331 = vadd.f32 %v2327, 1e-05
    %v2332 = vadd.f32 %v2328, 1e-05
    %v2333 = vrsqrt.pop %v2329
    %v2334 = vrsqrt.pop %v2330
    %v2335 = vrsqrt.pop %v2331
    %v2336 = vrsqrt.pop %v2332
    %v2337 = vmul.f32 %v2305, %v2333
    %v2338 = vmul.f32 %v2306, %v2334
    %v2339 = vmul.f32 %v2307, %v2335
    %v2340 = vmul.f32 %v2308, %v2336
    %v2342 = vlaneseq
    %v2343 = vshrl.u32 %v2342, 7
    %v2344 = vsub.s32 0, %v2343
    %v2345 = vrot.slane %v2287, %v2344
    %v2347 = vmul.f32 %v2337, %v2345
    %v2348 = vmul.f32 %v2338, %v2345
    %v2349 = vmul.f32 %v2339, %v2345
    %v2350 = vmul.f32 %v2340, %v2345
    %v2352 = vlaneseq
    %v2353 = vshrl.u32 %v2352, 7
    %v2354 = vsub.s32 0, %v2353
    %v2355 = vrot.slane %v2288, %v2354
    %v2357 = vadd.f32 %v2347, %v2355
    %v2358 = vadd.f32 %v2348, %v2355
    %v2359 = vadd.f32 %v2349, %v2355
    %v2360 = vadd.f32 %v2350, %v2355
    %2361 = vst.msk [vmem:[#allocation2] sm:$0xff] %vm65, %v2357
    %2362 = vst.msk [vmem:[#allocation2 + $0x8] sm:$0xff] %vm65, %v2358
    %2363 = vst.msk [vmem:[#allocation2 + $0x10] sm:$0xff] %vm65, %v2359
    %2364 = vst.msk [vmem:[#allocation2 + $0x18] sm:$0xff] %vm65, %v2360
    // Predicated region
    $region58: #{encoder_forward.1} parent=1 // pred_check
      _
    $region59: #{encoder_forward.1} parent=1 // pred_check_branch
      %2366 = sbr.rel (0) target = $region61
    $region60: #{encoder_forward.1} parent=1 // pred_region
      %s2368 = ssub.s32 512, 512
      %2369 = vsyncadd [#allocation3], %s2368
      %s2370 = sshll.u32 [#allocation2], 4
      %s2371 = int_to_ptr.vmem [resolvable:$true] %s2370
      %2376 = dma.vmem_to_hbm [thread:$0]  %s2371, 512, %s14, [#allocation3], 128, 128, 8
    $region61: #{encoder_forward.1} parent=1 // pred_fallthru
      _
    // Predicated region
    $region62: #{encoder_forward.1} parent=1 // pred_check
      _
    $region63: #{encoder_forward.1} parent=1 // pred_check_branch
      %2378 = sbr.rel (0) target = $region65
    $region64: #{encoder_forward.1} parent=1 // pred_region
      _
    $region65: #{encoder_forward.1} parent=1 // pred_fallthru
      _
    // Predicated region
    $region66: #{encoder_forward.1} parent=1 // pred_check
      _
    $region67: #{encoder_forward.1} parent=1 // pred_check_branch
      %2380 = sbr.rel (0) target = $region69
    $region68: #{encoder_forward.1} parent=1 // pred_region
      %2381 = dma.done [#allocation3], 512
    $region69: #{encoder_forward.1} parent=1 // pred_fallthru
      _
    // Predicated region
    $region70: #{encoder_forward.1} parent=1 // pred_check
      _
    $region71: #{encoder_forward.1} parent=1 // pred_check_branch
      %2383 = sbr.rel (0) target = $region73
    $region72: #{encoder_forward.1} parent=1 // pred_region
      _
    $region73: #{encoder_forward.1} parent=1 // pred_fallthru
      _
    %2384 = vsyncpa [#allocation3], 1

</llo_original>
